<compile_context>
chip_gen: v7x
topology: tpu7x:2x2x1
jax: 0.10.0
libtpu: 0.0.40
codegen_flags: <defaults>
</compile_context>

<pallas_src>
import functools

import jax
import jax.numpy as jnp
import numpy as np
from jax.experimental import pallas as pl
from jax.experimental.pallas import tpu as pltpu


def _fused_blocks_kernel(x_ref, w_ref, b_ref, g_ref, be_ref, m_ref,
                         o_ref, xpad_ref, *, Bblk, H, WC, WCo, K, pad, top,
                         num_blcks, eps, compute_dtype):
    """Whole BlockLayer chain for `Bblk` batch elements (one grid step).

    x_ref    : (Bblk*H, WC)       lane-dense stacked activation (compute dtype)
    w_ref    : (nb, K*WC, WCo)    banded conv weights (W 'same'-padding folded in)
    b_ref    : (nb, Bblk*H, WCo)  per-row fused bias (conv bias + time-emb proj), f32
    g_ref    : (nb, 1, WCo)       LayerNorm gamma, pre-tiled over W, f32
    be_ref   : (nb, 1, WCo)       LayerNorm beta,  pre-tiled over W, f32
    m_ref    : (WCo, WCo)         block-diag per-pixel channel-averaging matrix, f32
    o_ref    : (Bblk*H, WCo)      lane-dense output, f32
    xpad_ref : (Bblk, HP, WC)     per-batch H-halo'd activation scratch (compute dtype)
    """
    M = Bblk * H

    # Halo rows must be zero; interior rows are rewritten every block.
    xpad_ref[...] = jnp.zeros_like(xpad_ref)

    m_full = m_ref[...]                      # hoisted: loaded once for all blocks
    h_mxu = x_ref[...]                       # (M, WC) activation fed to the MXU
    h_f32 = None

    for blk in range(num_blcks):             # TODO(synk): lax.fori_loop if num_blcks grows
        # Aligned interior rewrite of the per-batch H-halo'd activation
        # (interior starts at sublane offset `top` == 8 -> unmasked stores).
        xpad_ref[:, top:top + H, :] = h_mxu.reshape(Bblk, H, WC)

        # 3x3 conv as K per-tap matmuls accumulating in f32: no (H, K*WC)
        # im2col temp; each tap is a direct slab read of the halo'd scratch.
        acc = None
        for dy in range(K):
            start = top - pad + dy
            slab = xpad_ref[:, start:start + H, :].reshape(M, WC)
            part = jnp.dot(slab, w_ref[blk, dy * WC:(dy + 1) * WC, :],
                           preferred_element_type=jnp.float32)
            acc = part if acc is None else acc + part          # (M, WCo) f32

        # Conv bias + time-embedding projection (pre-fused per row on host).
        acc = acc + b_ref[blk]

        # LayerNorm over channels with ONE stats matmul: stack [x; x^2] along
        # sublanes, hit the block-diagonal averaging matrix once, then
        # var = E[x^2] - mean^2 (f32 stats, clamped before the EUP rsqrt).
        stacked = jnp.concatenate([acc, acc * acc], axis=0)    # (2M, WCo)
        stats = jnp.dot(stacked, m_full, preferred_element_type=jnp.float32)
        mean = stats[:M]
        var = jnp.maximum(stats[M:] - mean * mean, 0.0)
        hn = (acc - mean) * jax.lax.rsqrt(var + eps)
        hn = hn * g_ref[blk] + be_ref[blk]

        # ReLU; C == Cout so the result feeds the next block directly.
        h_f32 = jnp.maximum(hn, 0.0)                           # (M, WCo) f32
        h_mxu = h_f32.astype(compute_dtype)                    # bf16 in low-precision mode

    o_ref[...] = h_f32.astype(o_ref.dtype)   # full 128-lane (unmasked) stores


def _band_weight(w_hwio, C, W, K, pad):
    """(K, K, Cin, Cout) HWIO conv weight -> banded (K*W*C, W*Cout) matrix.

    Row index  = (dy*W + xw)*C + ci  (dy = vertical tap, xw = source column).
    Col index  = x*Cout + co         (x  = output column).
    Entries outside the band (|xw - x| > pad) are zero, which implements the
    'same' zero-padding along W without materializing a W halo.
    """
    _, _, Cin, Cout = w_hwio.shape
    if Cin < C:
        w_hwio = jnp.pad(w_hwio, ((0, 0), (0, 0), (0, C - Cin), (0, 0)))
    xw = jnp.arange(W)[:, None]                     # source column
    x = jnp.arange(W)[None, :]                      # output column
    dx = xw - x + pad                               # horizontal tap index (W, W)
    valid = (dx >= 0) & (dx < K)
    dx_c = jnp.clip(dx, 0, K - 1)
    w_g = w_hwio[:, dx_c, :, :]                     # (K, W_src, W_dst, C, Cout)
    wb = jnp.where(valid[None, :, :, None, None], w_g, 0.0)
    wb = jnp.transpose(wb, (0, 1, 3, 2, 4))         # (K, W_src, C, W_dst, Cout)
    return wb.reshape(K * W * C, W * Cout)


def block_layer_forward(x_nchw, t, all_params, *, kernel_size=3, eps=1e-5,
                        compute_dtype=jnp.float32, batch_block=None):
    """BlockLayer.forward: all blocks fused into one pallas_call.  Input NCHW."""
    B, Cin, H, W = x_nchw.shape
    K = kernel_size
    pad = K // 2
    num_blcks = len(all_params)
    Cout = all_params[0][0].shape[-1]
    # TODO(synk): planes_in > planes_out would need channel re-padding between
    # blocks inside the kernel; not needed for this module configuration.
    assert Cin <= Cout, "fused kernel assumes planes_in <= planes_out"
    C = Cout
    WC = W * C
    WCo = W * Cout
    assert H % 8 == 0, "H must be a sublane multiple for the aligned halo layout"

    # Batch stacking: whole batch per grid step by default (one big MXU M, best
    # on v5e/v6e); pass batch_block=ceil(B/2) on v7x so each TC gets half.
    if batch_block is None:
        batch_block = B
    assert B % batch_block == 0
    n_steps = B // batch_block
    M = batch_block * H

    # NCHW -> NHWC -> zero-pad channels to C -> lane-dense stacked rows (B*H, W*C).
    x = jnp.transpose(x_nchw, (0, 2, 3, 1))
    if Cin < C:
        x = jnp.pad(x, ((0, 0), (0, 0), (0, 0), (0, C - Cin)))
    x_rows = x.reshape(B * H, WC).astype(compute_dtype)

    # Host-side precompute (tiny one-time XLA ops): banded conv weights, fused
    # per-row bias (conv bias + time-emb projection), pre-tiled gamma/beta.
    wband, fbias, gammas, betas = [], [], [], []
    for (w, b, wt, bt, gamma, beta) in all_params:
        wband.append(_band_weight(w, C, W, K, pad).astype(compute_dtype))
        fb = b.reshape(1, -1) + t @ wt + bt.reshape(1, -1)       # (B, Cout)
        fb = jnp.tile(fb, (1, W))                                # (B, W*Cout)
        fbias.append(jnp.repeat(fb, H, axis=0))                  # (B*H, W*Cout)
        gammas.append(jnp.tile(gamma.reshape(1, -1), (1, W)))
        betas.append(jnp.tile(beta.reshape(1, -1), (1, W)))
    wband_all = jnp.stack(wband, axis=0)       # (nb, K*WC, WCo)  compute dtype
    bias_all = jnp.stack(fbias, axis=0)        # (nb, B*H, WCo)   f32
    gamma_all = jnp.stack(gammas, axis=0)      # (nb, 1, WCo)     f32
    beta_all = jnp.stack(betas, axis=0)        # (nb, 1, WCo)     f32
    # Block-diagonal per-pixel channel-averaging matrix for LayerNorm stats.
    m_full = jnp.kron(jnp.eye(W, dtype=jnp.float32),
                      jnp.full((Cout, Cout), 1.0 / Cout, jnp.float32))

    top = 8                                    # aligned interior offset (sublane tile)
    hp = top + ((H + pad + 7) // 8) * 8        # halo'd scratch rows, sublane multiple

    kernel = functools.partial(
        _fused_blocks_kernel, Bblk=batch_block, H=H, WC=WC, WCo=WCo, K=K,
        pad=pad, top=top, num_blcks=num_blcks, eps=eps,
        compute_dtype=compute_dtype)

    out_rows = pl.pallas_call(
        kernel,
        out_shape=jax.ShapeDtypeStruct((B * H, WCo), jnp.float32),
        grid_spec=pltpu.PrefetchScalarGridSpec(
            num_scalar_prefetch=0,
            grid=(n_steps,),
            in_specs=[
                pl.BlockSpec((M, WC), lambda s: (s, 0)),
                # TODO(synk): at large W/C/num_blcks stream one block's weight
                # per trailing 'arbitrary' grid axis and single-buffer the
                # grid-invariant operands to fit v7x's 64 MiB VMEM.
                pl.BlockSpec((num_blcks, K * WC, WCo), lambda s: (0, 0, 0)),
                pl.BlockSpec((num_blcks, M, WCo), lambda s: (0, s, 0)),
                pl.BlockSpec((num_blcks, 1, WCo), lambda s: (0, 0, 0)),
                pl.BlockSpec((num_blcks, 1, WCo), lambda s: (0, 0, 0)),
                pl.BlockSpec((WCo, WCo), lambda s: (0, 0)),
            ],
            out_specs=pl.BlockSpec((M, WCo), lambda s: (s, 0)),
            scratch_shapes=[pltpu.VMEM((batch_block, hp, WC), compute_dtype)],
        ),
        compiler_params=pltpu.CompilerParams(
            dimension_semantics=("parallel",)),
    )(x_rows, wband_all, bias_all, gamma_all, beta_all, m_full)

    out = out_rows.reshape(B, H, W, Cout)                       # free, wrapper side
    return jnp.transpose(out, (0, 3, 1, 2))                     # NHWC -> NCHW


def init_block_params(key, planes_in, planes_out, kernel_size, time_emb_dim):
    """Deterministic synthetic parameters for one block (HWIO conv weights)."""
    k_conv, k_bias, k_wt, k_bt = jax.random.split(key, 4)
    fan_in = planes_in * kernel_size * kernel_size
    w = jax.random.normal(
        k_conv, (kernel_size, kernel_size, planes_in, planes_out),
        jnp.float32) * (1.0 / np.sqrt(fan_in))
    b = jax.random.normal(k_bias, (1, planes_out), jnp.float32) * 0.01
    wt = jax.random.normal(
        k_wt, (time_emb_dim, planes_out), jnp.float32) * (1.0 / np.sqrt(time_emb_dim))
    bt = jax.random.normal(k_bt, (1, planes_out), jnp.float32) * 0.01
    gamma = jnp.ones((1, planes_out), jnp.float32)
    beta = jnp.zeros((1, planes_out), jnp.float32)
    return (w, b, wt, bt, gamma, beta)


def _ref_block(x_nhwc, t, params, eps=1e-5):
    """Pure-JAX reference for one block (for correctness check)."""
    w, b, wt, bt, gamma, beta = params
    y = jax.lax.conv_general_dilated(
        x_nhwc, w, window_strides=(1, 1), padding="SAME",
        dimension_numbers=("NHWC", "HWIO", "NHWC"))
    y = y + b.reshape(1, 1, 1, -1)
    temb = t @ wt + bt                                 # (B, Cout)
    y = y + temb[:, None, None, :]
    mean = y.mean(-1, keepdims=True)
    var = ((y - mean) ** 2).mean(-1, keepdims=True)
    y = (y - mean) * jax.lax.rsqrt(var + eps)
    y = y * gamma.reshape(1, 1, 1, -1) + beta.reshape(1, 1, 1, -1)
    return jnp.maximum(y, 0.0)


if __name__ == "__main__":
    # Small shapes consistent with the module's constructor arguments.
    num_blcks = 2
    B, Cin, Cout, H, W = 2, 4, 8, 16, 16
    kernel_size = 3
    time_emb_dim = 32

    key = jax.random.PRNGKey(0)
    kx, kt, kp = jax.random.split(key, 3)

    x = jax.random.normal(kx, (B, Cin, H, W), jnp.float32)        # NCHW input
    t = jax.random.normal(kt, (B, time_emb_dim), jnp.float32)     # time embedding

    # BlockLayer.__init__: first block Cin->Cout, remaining Cout->Cout.
    all_params = []
    planes_in = Cin
    pkeys = jax.random.split(kp, num_blcks)
    for i in range(num_blcks):
        all_params.append(init_block_params(
            pkeys[i], planes_in, Cout, kernel_size, time_emb_dim))
        planes_in = Cout

    # Pure-JAX reference of the chained blocks.
    xr = jnp.transpose(x, (0, 2, 3, 1))
    for params in all_params:
        xr = _ref_block(xr, t, params)
    ref = np.asarray(jnp.transpose(xr, (0, 3, 1, 2)))

    # f32 compute path: tight correctness check.
    out = block_layer_forward(x, t, all_params, kernel_size=kernel_size)
    out = jax.block_until_ready(out)
    assert out.shape == (B, Cout, H, W), out.shape
    np.testing.assert_allclose(np.asarray(out), ref, rtol=1e-4, atol=1e-4)

    # bf16 MXU path (perf mode on v6e/v7x): looser tolerance.
    out_bf16 = block_layer_forward(x, t, all_params, kernel_size=kernel_size,
                                   compute_dtype=jnp.bfloat16)
    out_bf16 = jax.block_until_ready(out_bf16)
    np.testing.assert_allclose(np.asarray(out_bf16), ref, rtol=5e-2, atol=5e-2)

    print("KERNEL_OK")
</pallas_src>

<mosaic_0001>
module attributes {stable_mosaic.version = 11 : i64} {
  func.func @_fused_blocks_kernel(%arg0: i32, %arg1: memref<32x128xf32, #tpu.memory_space<vmem>>, %arg2: memref<2x384x128xf32, #tpu.memory_space<vmem>>, %arg3: memref<2x32x128xf32, #tpu.memory_space<vmem>>, %arg4: memref<2x1x128xf32, #tpu.memory_space<vmem>>, %arg5: memref<2x1x128xf32, #tpu.memory_space<vmem>>, %arg6: memref<128x128xf32, #tpu.memory_space<vmem>>, %arg7: memref<32x128xf32, #tpu.memory_space<vmem>>, %arg8: memref<2x32x128xf32, #tpu.memory_space<vmem>>) attributes {dimension_semantics = [#tpu.dimension_semantics<parallel>], iteration_bounds = array<i64: 1>, scalar_prefetch = 0 : i64, scratch_operands = 1 : i64, tpu.core_type = #tpu.core_type<tc>, window_params = [{transform_indices = @transform_0, window_bounds = array<i64: 32, 128>}, {pipeline_mode = #tpu.pipeline_mode<synchronous>, transform_indices = @transform_1, window_bounds = array<i64: 2, 384, 128>}, {transform_indices = @transform_2, window_bounds = array<i64: 2, 32, 128>}, {pipeline_mode = #tpu.pipeline_mode<synchronous>, transform_indices = @transform_3, window_bounds = array<i64: 2, 1, 128>}, {pipeline_mode = #tpu.pipeline_mode<synchronous>, transform_indices = @transform_4, window_bounds = array<i64: 2, 1, 128>}, {pipeline_mode = #tpu.pipeline_mode<synchronous>, transform_indices = @transform_5, window_bounds = array<i64: 128, 128>}, {transform_indices = @transform_6, window_bounds = array<i64: 32, 128>}]} {
    %cst = arith.constant 0.000000e+00 : f32
    %0 = vector.broadcast %cst : f32 to vector<2x32x128xf32>
    %c0 = arith.constant 0 : index
    %c0_0 = arith.constant 0 : index
    %c0_1 = arith.constant 0 : index
    %1 = vector.load %arg8[%c0, %c0_0, %c0_1] : memref<2x32x128xf32, #tpu.memory_space<vmem>>, vector<2x32x128xf32>
    tpu.vector_store %arg8[%c0, %c0_0, %c0_1], %0 {strides = array<i32>} : memref<2x32x128xf32, #tpu.memory_space<vmem>>, vector<2x32x128xf32>,
    %c0_2 = arith.constant 0 : index
    %c0_3 = arith.constant 0 : index
    %2 = vector.load %arg6[%c0_2, %c0_3] : memref<128x128xf32, #tpu.memory_space<vmem>>, vector<128x128xf32>
    %c0_4 = arith.constant 0 : index
    %c0_5 = arith.constant 0 : index
    %3 = vector.load %arg1[%c0_4, %c0_5] : memref<32x128xf32, #tpu.memory_space<vmem>>, vector<32x128xf32>
    %4 = vector.shape_cast %3 : vector<32x128xf32> to vector<2x16x128xf32>
    %c0_6 = arith.constant 0 : index
    %c8 = arith.constant 8 : index
    %c0_7 = arith.constant 0 : index
    %5 = vector.load %arg8[%c0_6, %c8, %c0_7] : memref<2x32x128xf32, #tpu.memory_space<vmem>>, vector<2x16x128xf32>
    tpu.vector_store %arg8[%c0_6, %c8, %c0_7], %4 {strides = array<i32>} : memref<2x32x128xf32, #tpu.memory_space<vmem>>, vector<2x16x128xf32>,
    %c0_8 = arith.constant 0 : index
    %c7 = arith.constant 7 : index
    %c0_9 = arith.constant 0 : index
    %6 = vector.load %arg8[%c0_8, %c7, %c0_9] : memref<2x32x128xf32, #tpu.memory_space<vmem>>, vector<2x16x128xf32>
    %7 = vector.shape_cast %6 : vector<2x16x128xf32> to vector<32x128xf32>
    %c0_10 = arith.constant 0 : index
    %c0_11 = arith.constant 0 : index
    %c0_12 = arith.constant 0 : index
    %8 = vector.load %arg2[%c0_10, %c0_11, %c0_12] : memref<2x384x128xf32, #tpu.memory_space<vmem>>, vector<1x128x128xf32>
    %9 = vector.shape_cast %8 : vector<1x128x128xf32> to vector<128x128xf32>
    %cst_13 = arith.constant dense<0.000000e+00> : vector<32x128xf32>
    %10 = tpu.matmul %7, %9, %cst_13 {dimension_numbers = #tpu.dot_dimension_numbers<[1], [0], [0], [1], [0, 0, 1, 1], [], []>} : vector<32x128xf32>, vector<128x128xf32>, vector<32x128xf32> -> vector<32x128xf32>
    %c0_14 = arith.constant 0 : index
    %c8_15 = arith.constant 8 : index
    %c0_16 = arith.constant 0 : index
    %11 = vector.load %arg8[%c0_14, %c8_15, %c0_16] : memref<2x32x128xf32, #tpu.memory_space<vmem>>, vector<2x16x128xf32>
    %12 = vector.shape_cast %11 : vector<2x16x128xf32> to vector<32x128xf32>
    %c0_17 = arith.constant 0 : index
    %c128 = arith.constant 128 : index
    %c0_18 = arith.constant 0 : index
    %13 = vector.load %arg2[%c0_17, %c128, %c0_18] : memref<2x384x128xf32, #tpu.memory_space<vmem>>, vector<1x128x128xf32>
    %14 = vector.shape_cast %13 : vector<1x128x128xf32> to vector<128x128xf32>
    %cst_19 = arith.constant dense<0.000000e+00> : vector<32x128xf32>
    %15 = tpu.matmul %12, %14, %cst_19 {dimension_numbers = #tpu.dot_dimension_numbers<[1], [0], [0], [1], [0, 0, 1, 1], [], []>} : vector<32x128xf32>, vector<128x128xf32>, vector<32x128xf32> -> vector<32x128xf32>
    %16 = arith.addf %10, %15 : vector<32x128xf32>
    %c0_20 = arith.constant 0 : index
    %c9 = arith.constant 9 : index
    %c0_21 = arith.constant 0 : index
    %17 = vector.load %arg8[%c0_20, %c9, %c0_21] : memref<2x32x128xf32, #tpu.memory_space<vmem>>, vector<2x16x128xf32>
    %18 = vector.shape_cast %17 : vector<2x16x128xf32> to vector<32x128xf32>
    %c0_22 = arith.constant 0 : index
    %c256 = arith.constant 256 : index
    %c0_23 = arith.constant 0 : index
    %19 = vector.load %arg2[%c0_22, %c256, %c0_23] : memref<2x384x128xf32, #tpu.memory_space<vmem>>, vector<1x128x128xf32>
    %20 = vector.shape_cast %19 : vector<1x128x128xf32> to vector<128x128xf32>
    %cst_24 = arith.constant dense<0.000000e+00> : vector<32x128xf32>
    %21 = tpu.matmul %18, %20, %cst_24 {dimension_numbers = #tpu.dot_dimension_numbers<[1], [0], [0], [1], [0, 0, 1, 1], [], []>} : vector<32x128xf32>, vector<128x128xf32>, vector<32x128xf32> -> vector<32x128xf32>
    %22 = arith.addf %16, %21 : vector<32x128xf32>
    %c0_25 = arith.constant 0 : index
    %c0_26 = arith.constant 0 : index
    %c0_27 = arith.constant 0 : index
    %23 = vector.load %arg3[%c0_25, %c0_26, %c0_27] : memref<2x32x128xf32, #tpu.memory_space<vmem>>, vector<1x32x128xf32>
    %24 = vector.shape_cast %23 : vector<1x32x128xf32> to vector<32x128xf32>
    %25 = arith.addf %22, %24 : vector<32x128xf32>
    %26 = arith.mulf %25, %25 : vector<32x128xf32>
    %27 = tpu.concatenate %25, %26 in 0 : vector<32x128xf32>, vector<32x128xf32> -> vector<64x128xf32>
    %cst_28 = arith.constant dense<0.000000e+00> : vector<64x128xf32>
    %28 = tpu.matmul %27, %2, %cst_28 {dimension_numbers = #tpu.dot_dimension_numbers<[1], [0], [0], [1], [0, 0, 1, 1], [], []>} : vector<64x128xf32>, vector<128x128xf32>, vector<64x128xf32> -> vector<64x128xf32>
    %29 = vector.extract_strided_slice %28 {offsets = [0, 0], sizes = [32, 128], strides = [1, 1]} : vector<64x128xf32> to vector<32x128xf32>
    %30 = vector.extract_strided_slice %28 {offsets = [32, 0], sizes = [32, 128], strides = [1, 1]} : vector<64x128xf32> to vector<32x128xf32>
    %31 = arith.mulf %29, %29 : vector<32x128xf32>
    %32 = arith.subf %30, %31 : vector<32x128xf32>
    %cst_29 = arith.constant 0.000000e+00 : f32
    %33 = vector.broadcast %cst_29 : f32 to vector<32x128xf32>
    %34 = arith.maximumf %32, %33 : vector<32x128xf32>
    %35 = arith.subf %25, %29 : vector<32x128xf32>
    %cst_30 = arith.constant 9.99999974E-6 : f32
    %36 = vector.broadcast %cst_30 : f32 to vector<32x128xf32>
    %37 = arith.addf %34, %36 : vector<32x128xf32>
    %38 = math.rsqrt %37 : vector<32x128xf32>
    %39 = arith.mulf %35, %38 : vector<32x128xf32>
    %c0_31 = arith.constant 0 : index
    %c0_32 = arith.constant 0 : index
    %c0_33 = arith.constant 0 : index
    %40 = vector.load %arg4[%c0_31, %c0_32, %c0_33] : memref<2x1x128xf32, #tpu.memory_space<vmem>>, vector<1x1x128xf32>
    %41 = vector.shape_cast %40 : vector<1x1x128xf32> to vector<1x128xf32>
    %42 = vector.broadcast %41 : vector<1x128xf32> to vector<32x128xf32>
    %43 = arith.mulf %39, %42 : vector<32x128xf32>
    %c0_34 = arith.constant 0 : index
    %c0_35 = arith.constant 0 : index
    %c0_36 = arith.constant 0 : index
    %44 = vector.load %arg5[%c0_34, %c0_35, %c0_36] : memref<2x1x128xf32, #tpu.memory_space<vmem>>, vector<1x1x128xf32>
    %45 = vector.shape_cast %44 : vector<1x1x128xf32> to vector<1x128xf32>
    %46 = vector.broadcast %45 : vector<1x128xf32> to vector<32x128xf32>
    %47 = arith.addf %43, %46 : vector<32x128xf32>
    %cst_37 = arith.constant 0.000000e+00 : f32
    %48 = vector.broadcast %cst_37 : f32 to vector<32x128xf32>
    %49 = arith.maximumf %47, %48 : vector<32x128xf32>
    %50 = vector.shape_cast %49 : vector<32x128xf32> to vector<2x16x128xf32>
    %c0_38 = arith.constant 0 : index
    %c8_39 = arith.constant 8 : index
    %c0_40 = arith.constant 0 : index
    %51 = vector.load %arg8[%c0_38, %c8_39, %c0_40] : memref<2x32x128xf32, #tpu.memory_space<vmem>>, vector<2x16x128xf32>
    tpu.vector_store %arg8[%c0_38, %c8_39, %c0_40], %50 {strides = array<i32>} : memref<2x32x128xf32, #tpu.memory_space<vmem>>, vector<2x16x128xf32>,
    %c0_41 = arith.constant 0 : index
    %c7_42 = arith.constant 7 : index
    %c0_43 = arith.constant 0 : index
    %52 = vector.load %arg8[%c0_41, %c7_42, %c0_43] : memref<2x32x128xf32, #tpu.memory_space<vmem>>, vector<2x16x128xf32>
    %53 = vector.shape_cast %52 : vector<2x16x128xf32> to vector<32x128xf32>
    %c1 = arith.constant 1 : index
    %c0_44 = arith.constant 0 : index
    %c0_45 = arith.constant 0 : index
    %54 = vector.load %arg2[%c1, %c0_44, %c0_45] : memref<2x384x128xf32, #tpu.memory_space<vmem>>, vector<1x128x128xf32>
    %55 = vector.shape_cast %54 : vector<1x128x128xf32> to vector<128x128xf32>
    %cst_46 = arith.constant dense<0.000000e+00> : vector<32x128xf32>
    %56 = tpu.matmul %53, %55, %cst_46 {dimension_numbers = #tpu.dot_dimension_numbers<[1], [0], [0], [1], [0, 0, 1, 1], [], []>} : vector<32x128xf32>, vector<128x128xf32>, vector<32x128xf32> -> vector<32x128xf32>
    %c0_47 = arith.constant 0 : index
    %c8_48 = arith.constant 8 : index
    %c0_49 = arith.constant 0 : index
    %57 = vector.load %arg8[%c0_47, %c8_48, %c0_49] : memref<2x32x128xf32, #tpu.memory_space<vmem>>, vector<2x16x128xf32>
    %58 = vector.shape_cast %57 : vector<2x16x128xf32> to vector<32x128xf32>
    %c1_50 = arith.constant 1 : index
    %c128_51 = arith.constant 128 : index
    %c0_52 = arith.constant 0 : index
    %59 = vector.load %arg2[%c1_50, %c128_51, %c0_52] : memref<2x384x128xf32, #tpu.memory_space<vmem>>, vector<1x128x128xf32>
    %60 = vector.shape_cast %59 : vector<1x128x128xf32> to vector<128x128xf32>
    %cst_53 = arith.constant dense<0.000000e+00> : vector<32x128xf32>
    %61 = tpu.matmul %58, %60, %cst_53 {dimension_numbers = #tpu.dot_dimension_numbers<[1], [0], [0], [1], [0, 0, 1, 1], [], []>} : vector<32x128xf32>, vector<128x128xf32>, vector<32x128xf32> -> vector<32x128xf32>
    %62 = arith.addf %56, %61 : vector<32x128xf32>
    %c0_54 = arith.constant 0 : index
    %c9_55 = arith.constant 9 : index
    %c0_56 = arith.constant 0 : index
    %63 = vector.load %arg8[%c0_54, %c9_55, %c0_56] : memref<2x32x128xf32, #tpu.memory_space<vmem>>, vector<2x16x128xf32>
    %64 = vector.shape_cast %63 : vector<2x16x128xf32> to vector<32x128xf32>
    %c1_57 = arith.constant 1 : index
    %c256_58 = arith.constant 256 : index
    %c0_59 = arith.constant 0 : index
    %65 = vector.load %arg2[%c1_57, %c256_58, %c0_59] : memref<2x384x128xf32, #tpu.memory_space<vmem>>, vector<1x128x128xf32>
    %66 = vector.shape_cast %65 : vector<1x128x128xf32> to vector<128x128xf32>
    %cst_60 = arith.constant dense<0.000000e+00> : vector<32x128xf32>
    %67 = tpu.matmul %64, %66, %cst_60 {dimension_numbers = #tpu.dot_dimension_numbers<[1], [0], [0], [1], [0, 0, 1, 1], [], []>} : vector<32x128xf32>, vector<128x128xf32>, vector<32x128xf32> -> vector<32x128xf32>
    %68 = arith.addf %62, %67 : vector<32x128xf32>
    %c1_61 = arith.constant 1 : index
    %c0_62 = arith.constant 0 : index
    %c0_63 = arith.constant 0 : index
    %69 = vector.load %arg3[%c1_61, %c0_62, %c0_63] : memref<2x32x128xf32, #tpu.memory_space<vmem>>, vector<1x32x128xf32>
    %70 = vector.shape_cast %69 : vector<1x32x128xf32> to vector<32x128xf32>
    %71 = arith.addf %68, %70 : vector<32x128xf32>
    %72 = arith.mulf %71, %71 : vector<32x128xf32>
    %73 = tpu.concatenate %71, %72 in 0 : vector<32x128xf32>, vector<32x128xf32> -> vector<64x128xf32>
    %cst_64 = arith.constant dense<0.000000e+00> : vector<64x128xf32>
    %74 = tpu.matmul %73, %2, %cst_64 {dimension_numbers = #tpu.dot_dimension_numbers<[1], [0], [0], [1], [0, 0, 1, 1], [], []>} : vector<64x128xf32>, vector<128x128xf32>, vector<64x128xf32> -> vector<64x128xf32>
    %75 = vector.extract_strided_slice %74 {offsets = [0, 0], sizes = [32, 128], strides = [1, 1]} : vector<64x128xf32> to vector<32x128xf32>
    %76 = vector.extract_strided_slice %74 {offsets = [32, 0], sizes = [32, 128], strides = [1, 1]} : vector<64x128xf32> to vector<32x128xf32>
    %77 = arith.mulf %75, %75 : vector<32x128xf32>
    %78 = arith.subf %76, %77 : vector<32x128xf32>
    %cst_65 = arith.constant 0.000000e+00 : f32
    %79 = vector.broadcast %cst_65 : f32 to vector<32x128xf32>
    %80 = arith.maximumf %78, %79 : vector<32x128xf32>
    %81 = arith.subf %71, %75 : vector<32x128xf32>
    %cst_66 = arith.constant 9.99999974E-6 : f32
    %82 = vector.broadcast %cst_66 : f32 to vector<32x128xf32>
    %83 = arith.addf %80, %82 : vector<32x128xf32>
    %84 = math.rsqrt %83 : vector<32x128xf32>
    %85 = arith.mulf %81, %84 : vector<32x128xf32>
    %c1_67 = arith.constant 1 : index
    %c0_68 = arith.constant 0 : index
    %c0_69 = arith.constant 0 : index
    %86 = vector.load %arg4[%c1_67, %c0_68, %c0_69] : memref<2x1x128xf32, #tpu.memory_space<vmem>>, vector<1x1x128xf32>
    %87 = vector.shape_cast %86 : vector<1x1x128xf32> to vector<1x128xf32>
    %88 = vector.broadcast %87 : vector<1x128xf32> to vector<32x128xf32>
    %89 = arith.mulf %85, %88 : vector<32x128xf32>
    %c1_70 = arith.constant 1 : index
    %c0_71 = arith.constant 0 : index
    %c0_72 = arith.constant 0 : index
    %90 = vector.load %arg5[%c1_70, %c0_71, %c0_72] : memref<2x1x128xf32, #tpu.memory_space<vmem>>, vector<1x1x128xf32>
    %91 = vector.shape_cast %90 : vector<1x1x128xf32> to vector<1x128xf32>
    %92 = vector.broadcast %91 : vector<1x128xf32> to vector<32x128xf32>
    %93 = arith.addf %89, %92 : vector<32x128xf32>
    %cst_73 = arith.constant 0.000000e+00 : f32
    %94 = vector.broadcast %cst_73 : f32 to vector<32x128xf32>
    %95 = arith.maximumf %93, %94 : vector<32x128xf32>
    %c0_74 = arith.constant 0 : index
    %c0_75 = arith.constant 0 : index
    %96 = vector.load %arg7[%c0_74, %c0_75] : memref<32x128xf32, #tpu.memory_space<vmem>>, vector<32x128xf32>
    tpu.vector_store %arg7[%c0_74, %c0_75], %95 {strides = array<i32>} : memref<32x128xf32, #tpu.memory_space<vmem>>, vector<32x128xf32>,
    return
  }
  func.func @transform_0(%arg0: i32) -> (i32, i32) {
    %c0_i32 = arith.constant 0 : i32
    %c0_i32_0 = arith.constant 0 : i32
    return %arg0, %c0_i32 : i32, i32
  }
  func.func @transform_1(%arg0: i32) -> (i32, i32, i32) {
    %c0_i32 = arith.constant 0 : i32
    %c0_i32_0 = arith.constant 0 : i32
    %c0_i32_1 = arith.constant 0 : i32
    %c0_i32_2 = arith.constant 0 : i32
    return %c0_i32, %c0_i32_0, %c0_i32_1 : i32, i32, i32
  }
  func.func @transform_2(%arg0: i32) -> (i32, i32, i32) {
    %c0_i32 = arith.constant 0 : i32
    %c0_i32_0 = arith.constant 0 : i32
    %c0_i32_1 = arith.constant 0 : i32
    return %c0_i32, %arg0, %c0_i32_0 : i32, i32, i32
  }
  func.func @transform_3(%arg0: i32) -> (i32, i32, i32) {
    %c0_i32 = arith.constant 0 : i32
    %c0_i32_0 = arith.constant 0 : i32
    %c0_i32_1 = arith.constant 0 : i32
    %c0_i32_2 = arith.constant 0 : i32
    return %c0_i32, %c0_i32_0, %c0_i32_1 : i32, i32, i32
  }
  func.func @transform_4(%arg0: i32) -> (i32, i32, i32) {
    %c0_i32 = arith.constant 0 : i32
    %c0_i32_0 = arith.constant 0 : i32
    %c0_i32_1 = arith.constant 0 : i32
    %c0_i32_2 = arith.constant 0 : i32
    return %c0_i32, %c0_i32_0, %c0_i32_1 : i32, i32, i32
  }
  func.func @transform_5(%arg0: i32) -> (i32, i32) {
    %c0_i32 = arith.constant 0 : i32
    %c0_i32_0 = arith.constant 0 : i32
    %c0_i32_1 = arith.constant 0 : i32
    return %c0_i32, %c0_i32_0 : i32, i32
  }
  func.func @transform_6(%arg0: i32) -> (i32, i32) {
    %c0_i32 = arith.constant 0 : i32
    %c0_i32_0 = arith.constant 0 : i32
    return %arg0, %c0_i32 : i32, i32
  }
}

</mosaic_0001>

<llo_original>
// kernel: tpu_custom_call.1
$region0: #{tpu_custom_call.1}
  #allocation0 [shape = 'u32[]', space=smem, size = 0x4, offset = 0x4, fixed_abs, tag = 'smem constant byte address 0x4 - core index']
  #allocation1 [shape = 'u32[144,128]{1,0:T(1,128)}', space=vmem, size = 0x12000, scoped, tag = 'internal scratch']
  #allocation2 [shape = 'f32[2,32,128]{2,1,0:T(8,128)}', space=vmem, size = 0x8000, scoped, tag = 'scratch operand']
  %s0 = inlined_call_operand.hbm [shape: f32[32,128], index: 0, kind: input, shape index: {}]
  %s1 = inlined_call_operand.hbm [shape: f32[2,384,128], index: 1, kind: input, shape index: {}]
  %s2 = inlined_call_operand.hbm [shape: f32[2,32,128], index: 2, kind: input, shape index: {}]
  %s3 = inlined_call_operand.vmem [shape: f32[2,1,128], index: 3, kind: input, shape index: {}]
  %s4 = inlined_call_operand.vmem [shape: f32[2,1,128], index: 4, kind: input, shape index: {}]
  %s5 = inlined_call_operand.hbm [shape: f32[128,128], index: 5, kind: input, shape index: {}]
  %s6 = inlined_call_operand.hbm [shape: f32[32,128], index: 6, kind: output, shape index: {}]
  %s7 = sld [smem:[#allocation0]]
  $region50: #{tpu_custom_call.1} parent=0
    _
  %s9 = ssub.s32 1, %s7
  %s10 = scalar_select 0, %s9, %s7
  $region1: #{tpu_custom_call.1} parent=0
    #allocation3 [shape = 'u8[16384]{0}', space=vmem, size = 0x4000, scoped, tag = 'input window, operand 0, single buffered']
    #allocation4 [shape = 's32[1]{0}', space=sflag, size = 0x4, scoped, tag = 'scoped memory for tpu_custom_call.1']
    #allocation5 [shape = 's32[1]{0}', space=sflag, size = 0x4, scoped, tag = 'scoped memory for tpu_custom_call.1']
    #allocation6 [shape = 'u8[393216]{0}', space=vmem, size = 0x60000, scoped, tag = 'input window, operand 1, single buffered']
    #allocation7 [shape = 's32[1]{0}', space=sflag, size = 0x4, scoped, tag = 'scoped memory for tpu_custom_call.1']
    #allocation8 [shape = 'u8[32768]{0}', space=vmem, size = 0x8000, scoped, tag = 'input window, operand 2, single buffered']
    #allocation9 [shape = 'u8[65536]{0}', space=vmem, size = 0x10000, scoped, tag = 'input window, operand 5, single buffered']
    #allocation10 [shape = 's32[1]{0}', space=sflag, size = 0x4, scoped, tag = 'scoped memory for tpu_custom_call.1']
    #allocation11 [shape = 'u8[16384]{0}', space=vmem, size = 0x4000, scoped, tag = 'output window, operand 0, single buffered']
    %11 = vsyncpa [#allocation4], 0
    %12 = vsyncpa [#allocation7], 0
    %13 = vsyncpa [#allocation10], 0
    %14 = vsyncpa [#allocation5], 0
    // Predicated region
    $region2: #{tpu_custom_call.1} parent=1 // pred_check
      _
    $region3: #{tpu_custom_call.1} parent=1 // pred_check_branch
      %16 = sbr.rel (0) target = $region5
    $region4: #{tpu_custom_call.1} parent=1 // pred_region
      %s18 = ssub.s32 512, 512
      %19 = vsyncadd [#allocation4], %s18
      %s20 = sshll.u32 [#allocation3], 4
      %s21 = int_to_ptr.vmem [resolvable:$true] %s20
      %26 = dma.hbm_to_vmem [thread:$0]  %s0, 512, %s21, [#allocation4], 128, 128, 8
    $region5: #{tpu_custom_call.1} parent=1 // pred_fallthru
      _
    // Predicated region
    $region6: #{tpu_custom_call.1} parent=1 // pred_check
      _
    $region7: #{tpu_custom_call.1} parent=1 // pred_check_branch
      %28 = sbr.rel (0) target = $region9
    $region8: #{tpu_custom_call.1} parent=1 // pred_region
      %s30 = ssub.s32 12288, 12288
      %31 = vsyncadd [#allocation7], %s30
      %s32 = sshll.u32 [#allocation6], 4
      %s33 = int_to_ptr.vmem [resolvable:$true] %s32
      %38 = dma.hbm_to_vmem [thread:$0]  %s1, 12288, %s33, [#allocation7], 128, 128, 8
    $region9: #{tpu_custom_call.1} parent=1 // pred_fallthru
      _
    // Predicated region
    $region10: #{tpu_custom_call.1} parent=1 // pred_check
      _
    $region11: #{tpu_custom_call.1} parent=1 // pred_check_branch
      %40 = sbr.rel (0) target = $region13
    $region12: #{tpu_custom_call.1} parent=1 // pred_region
      %s42 = ssub.s32 1024, 1024
      %43 = vsyncadd [#allocation7], %s42
      %s44 = sshll.u32 [#allocation8], 4
      %s45 = int_to_ptr.vmem [resolvable:$true] %s44
      %50 = dma.hbm_to_vmem [thread:$0]  %s2, 1024, %s45, [#allocation7], 128, 128, 8
    $region13: #{tpu_custom_call.1} parent=1 // pred_fallthru
      _
    // Predicated region
    $region14: #{tpu_custom_call.1} parent=1 // pred_check
      _
    $region15: #{tpu_custom_call.1} parent=1 // pred_check_branch
      %52 = sbr.rel (0) target = $region17
    $region16: #{tpu_custom_call.1} parent=1 // pred_region
      _
    $region17: #{tpu_custom_call.1} parent=1 // pred_fallthru
      _
    // Predicated region
    $region18: #{tpu_custom_call.1} parent=1 // pred_check
      _
    $region19: #{tpu_custom_call.1} parent=1 // pred_check_branch
      %54 = sbr.rel (0) target = $region21
    $region20: #{tpu_custom_call.1} parent=1 // pred_region
      _
    $region21: #{tpu_custom_call.1} parent=1 // pred_fallthru
      _
    // Predicated region
    $region22: #{tpu_custom_call.1} parent=1 // pred_check
      _
    $region23: #{tpu_custom_call.1} parent=1 // pred_check_branch
      %56 = sbr.rel (0) target = $region25
    $region24: #{tpu_custom_call.1} parent=1 // pred_region
      %s58 = ssub.s32 2048, 2048
      %59 = vsyncadd [#allocation10], %s58
      %s60 = sshll.u32 [#allocation9], 4
      %s61 = int_to_ptr.vmem [resolvable:$true] %s60
      %66 = dma.hbm_to_vmem [thread:$0]  %s5, 2048, %s61, [#allocation10], 128, 128, 8
    $region25: #{tpu_custom_call.1} parent=1 // pred_fallthru
      _
    // Predicated region
    $region26: #{tpu_custom_call.1} parent=1 // pred_check
      _
    $region27: #{tpu_custom_call.1} parent=1 // pred_check_branch
      %68 = sbr.rel (0) target = $region29
    $region28: #{tpu_custom_call.1} parent=1 // pred_region
      %69 = dma.done [#allocation4], 512
    $region29: #{tpu_custom_call.1} parent=1 // pred_fallthru
      _
    // Predicated region
    $region30: #{tpu_custom_call.1} parent=1 // pred_check
      _
    $region31: #{tpu_custom_call.1} parent=1 // pred_check_branch
      %71 = sbr.rel (0) target = $region33
    $region32: #{tpu_custom_call.1} parent=1 // pred_region
      %72 = dma.done [#allocation7], 12288
    $region33: #{tpu_custom_call.1} parent=1 // pred_fallthru
      _
    // Predicated region
    $region34: #{tpu_custom_call.1} parent=1 // pred_check
      _
    $region35: #{tpu_custom_call.1} parent=1 // pred_check_branch
      %74 = sbr.rel (0) target = $region37
    $region36: #{tpu_custom_call.1} parent=1 // pred_region
      %75 = dma.done [#allocation7], 1024
    $region37: #{tpu_custom_call.1} parent=1 // pred_fallthru
      _
    // Predicated region
    $region38: #{tpu_custom_call.1} parent=1 // pred_check
      _
    $region39: #{tpu_custom_call.1} parent=1 // pred_check_branch
      %77 = sbr.rel (0) target = $region41
    $region40: #{tpu_custom_call.1} parent=1 // pred_region
      %78 = dma.done [#allocation10], 2048
    $region41: #{tpu_custom_call.1} parent=1 // pred_fallthru
      _
    %79 = vst [vmem:[#allocation2] sm:$0xff] 0.0
    %80 = vst [vmem:[#allocation2 + $0x8] sm:$0xff] 0.0
    %81 = vst [vmem:[#allocation2 + $0x10] sm:$0xff] 0.0
    %82 = vst [vmem:[#allocation2 + $0x18] sm:$0xff] 0.0
    %83 = vst [vmem:[#allocation2 + $0x20] sm:$0xff] 0.0
    %84 = vst [vmem:[#allocation2 + $0x28] sm:$0xff] 0.0
    %85 = vst [vmem:[#allocation2 + $0x30] sm:$0xff] 0.0
    %86 = vst [vmem:[#allocation2 + $0x38] sm:$0xff] 0.0
    %v87 = vld [vmem:[#allocation9] sm:$0xff]
    %v88 = vld [vmem:[#allocation9 + $0x8] sm:$0xff]
    %v89 = vld [vmem:[#allocation9 + $0x10] sm:$0xff]
    %v90 = vld [vmem:[#allocation9 + $0x18] sm:$0xff]
    %v91 = vld [vmem:[#allocation9 + $0x20] sm:$0xff]
    %v92 = vld [vmem:[#allocation9 + $0x28] sm:$0xff]
    %v93 = vld [vmem:[#allocation9 + $0x30] sm:$0xff]
    %v94 = vld [vmem:[#allocation9 + $0x38] sm:$0xff]
    %v95 = vld [vmem:[#allocation9 + $0x40] sm:$0xff]
    %v96 = vld [vmem:[#allocation9 + $0x48] sm:$0xff]
    %v97 = vld [vmem:[#allocation9 + $0x50] sm:$0xff]
    %v98 = vld [vmem:[#allocation9 + $0x58] sm:$0xff]
    %v99 = vld [vmem:[#allocation9 + $0x60] sm:$0xff]
    %v100 = vld [vmem:[#allocation9 + $0x68] sm:$0xff]
    %v101 = vld [vmem:[#allocation9 + $0x70] sm:$0xff]
    %v102 = vld [vmem:[#allocation9 + $0x78] sm:$0xff]
    %v103 = vld [vmem:[#allocation3] sm:$0xff]
    %v104 = vld [vmem:[#allocation3 + $0x8] sm:$0xff]
    %v105 = vld [vmem:[#allocation3 + $0x10] sm:$0xff]
    %v106 = vld [vmem:[#allocation3 + $0x18] sm:$0xff]
    %107 = vst [vmem:[#allocation2 + $0x8] sm:$0xff] %v103
    %108 = vst [vmem:[#allocation2 + $0x10] sm:$0xff] %v104
    %109 = vst [vmem:[#allocation2 + $0x28] sm:$0xff] %v105
    %110 = vst [vmem:[#allocation2 + $0x30] sm:$0xff] %v106
    %v111 = vld [vmem:[#allocation2 + $0x7] sm:$0xff]
    %v112 = vld [vmem:[#allocation2 + $0xf] sm:$0xff]
    %v113 = vld [vmem:[#allocation2 + $0x27] sm:$0xff]
    %v114 = vld [vmem:[#allocation2 + $0x2f] sm:$0xff]
    %v115 = vld [vmem:[#allocation6] sm:$0xff]
    %v116 = vld [vmem:[#allocation6 + $0x8] sm:$0xff]
    %v117 = vld [vmem:[#allocation6 + $0x10] sm:$0xff]
    %v118 = vld [vmem:[#allocation6 + $0x18] sm:$0xff]
    %v119 = vld [vmem:[#allocation6 + $0x20] sm:$0xff]
    %v120 = vld [vmem:[#allocation6 + $0x28] sm:$0xff]
    %v121 = vld [vmem:[#allocation6 + $0x30] sm:$0xff]
    %v122 = vld [vmem:[#allocation6 + $0x38] sm:$0xff]
    %v123 = vld [vmem:[#allocation6 + $0x40] sm:$0xff]
    %v124 = vld [vmem:[#allocation6 + $0x48] sm:$0xff]
    %v125 = vld [vmem:[#allocation6 + $0x50] sm:$0xff]
    %v126 = vld [vmem:[#allocation6 + $0x58] sm:$0xff]
    %v127 = vld [vmem:[#allocation6 + $0x60] sm:$0xff]
    %v128 = vld [vmem:[#allocation6 + $0x68] sm:$0xff]
    %v129 = vld [vmem:[#allocation6 + $0x70] sm:$0xff]
    %v130 = vld [vmem:[#allocation6 + $0x78] sm:$0xff]
    %v131 = vld [vmem:[#allocation2 + $0x8] sm:$0xff]
    %v132 = vld [vmem:[#allocation2 + $0x10] sm:$0xff]
    %v133 = vld [vmem:[#allocation2 + $0x28] sm:$0xff]
    %v134 = vld [vmem:[#allocation2 + $0x30] sm:$0xff]
    %v135 = vld [vmem:[#allocation6 + $0x80] sm:$0xff]
    %v136 = vld [vmem:[#allocation6 + $0x88] sm:$0xff]
    %v137 = vld [vmem:[#allocation6 + $0x90] sm:$0xff]
    %v138 = vld [vmem:[#allocation6 + $0x98] sm:$0xff]
    %v139 = vld [vmem:[#allocation6 + $0xa0] sm:$0xff]
    %v140 = vld [vmem:[#allocation6 + $0xa8] sm:$0xff]
    %v141 = vld [vmem:[#allocation6 + $0xb0] sm:$0xff]
    %v142 = vld [vmem:[#allocation6 + $0xb8] sm:$0xff]
    %v143 = vld [vmem:[#allocation6 + $0xc0] sm:$0xff]
    %v144 = vld [vmem:[#allocation6 + $0xc8] sm:$0xff]
    %v145 = vld [vmem:[#allocation6 + $0xd0] sm:$0xff]
    %v146 = vld [vmem:[#allocation6 + $0xd8] sm:$0xff]
    %v147 = vld [vmem:[#allocation6 + $0xe0] sm:$0xff]
    %v148 = vld [vmem:[#allocation6 + $0xe8] sm:$0xff]
    %v149 = vld [vmem:[#allocation6 + $0xf0] sm:$0xff]
    %v150 = vld [vmem:[#allocation6 + $0xf8] sm:$0xff]
    %151 = vmatprep.subr.mxu0 0.0
    %152 = vmatpush1.msra.mxu0 %v135
    %153 = vmatprep.subr.mxu0 0.0
    %154 = vmatpush1.msra.mxu0 %v136
    %155 = vmatprep.subr.mxu0 0.0
    %156 = vmatpush1.msra.mxu0 %v137
    %157 = vmatprep.subr.mxu0 0.0
    %158 = vmatpush1.msra.mxu0 %v138
    %159 = vmatprep.subr.mxu0 0.0
    %160 = vmatpush1.msra.mxu0 %v139
    %161 = vmatprep.subr.mxu0 0.0
    %162 = vmatpush1.msra.mxu0 %v140
    %163 = vmatprep.subr.mxu0 0.0
    %164 = vmatpush1.msra.mxu0 %v141
    %165 = vmatprep.subr.mxu0 0.0
    %166 = vmatpush1.msra.mxu0 %v142
    %167 = vmatprep.subr.mxu0 0.0
    %168 = vmatpush1.msra.mxu0 %v143
    %169 = vmatprep.subr.mxu0 0.0
    %170 = vmatpush1.msra.mxu0 %v144
    %171 = vmatprep.subr.mxu0 0.0
    %172 = vmatpush1.msra.mxu0 %v145
    %173 = vmatprep.subr.mxu0 0.0
    %174 = vmatpush1.msra.mxu0 %v146
    %175 = vmatprep.subr.mxu0 0.0
    %176 = vmatpush1.msra.mxu0 %v147
    %177 = vmatprep.subr.mxu0 0.0
    %178 = vmatpush1.msra.mxu0 %v148
    %179 = vmatprep.subr.mxu0 0.0
    %180 = vmatpush1.msra.mxu0 %v149
    %181 = vmatprep.subr.mxu0 0.0
    %182 = vmatpush1.msra.mxu0 %v150
    %183 = vmatprep.subr.mxu0 0.0
    %184 = vmatpush1.msra.mxu0 0.0
    %185 = vmatprep.subr.mxu0 0.0
    %186 = vmatpush1.msra.mxu0 0.0
    %187 = vmatprep.subr.mxu0 0.0
    %188 = vmatpush1.msra.mxu0 0.0
    %189 = vmatprep.subr.mxu0 0.0
    %190 = vmatpush1.msra.mxu0 0.0
    %191 = vmatprep.subr.mxu0 0.0
    %192 = vmatpush1.msra.mxu0 0.0
    %193 = vmatprep.subr.mxu0 0.0
    %194 = vmatpush1.msra.mxu0 0.0
    %195 = vmatprep.subr.mxu0 0.0
    %196 = vmatpush1.msra.mxu0 0.0
    %197 = vmatprep.subr.mxu0 0.0
    %198 = vmatpush1.msra.mxu0 0.0
    %199 = vmatprep.subr.mxu0 0.0
    %200 = vmatpush1.msra.mxu0 0.0
    %201 = vmatprep.subr.mxu0 0.0
    %202 = vmatpush1.msra.mxu0 0.0
    %203 = vmatprep.subr.mxu0 0.0
    %204 = vmatpush1.msra.mxu0 0.0
    %205 = vmatprep.subr.mxu0 0.0
    %206 = vmatpush1.msra.mxu0 0.0
    %207 = vmatprep.subr.mxu0 0.0
    %208 = vmatpush1.msra.mxu0 0.0
    %209 = vmatprep.subr.mxu0 0.0
    %210 = vmatpush1.msra.mxu0 0.0
    %211 = vmatprep.subr.mxu0 0.0
    %212 = vmatpush1.msra.mxu0 0.0
    %213 = vmatprep.subr.mxu0 0.0
    %214 = vmatpush1.msra.mxu0 0.0
    %215 = vmatprep.mubr.f32.mxu0 0.0
    %216 = vmatmul.mubr.f32.gmra.mrb[0].mxu0 %v131
    %v217 = vpop.f32.mrb[0].mxu0
    %v218 = vadd.f32 0.0, %v217
    %v219 = vpop.f32.mrb[0].mxu0
    %220 = vmatprep.mubr.f32.mxu0 0.0
    %221 = vmatmul.mubr.f32.gmra.mrb[0].mxu0 %v132
    %v222 = vpop.f32.mrb[0].mxu0
    %v223 = vadd.f32 0.0, %v222
    %v224 = vpop.f32.mrb[0].mxu0
    %225 = vmatprep.mubr.f32.mxu0 0.0
    %226 = vmatmul.mubr.f32.gmra.mrb[0].mxu0 %v133
    %v227 = vpop.f32.mrb[0].mxu0
    %v228 = vadd.f32 0.0, %v227
    %v229 = vpop.f32.mrb[0].mxu0
    %230 = vmatprep.mubr.f32.mxu0 0.0
    %231 = vmatmul.mubr.f32.gmra.mrb[0].mxu0 %v134
    %v232 = vpop.f32.mrb[0].mxu0
    %v233 = vadd.f32 0.0, %v232
    %v234 = vpop.f32.mrb[0].mxu0
    %235 = vdwg.mxu0
    %236 = vmatprep.subr.mxu0 0.0
    %237 = vmatpush1.msra.mxu0 %v115
    %238 = vmatprep.subr.mxu0 0.0
    %239 = vmatpush1.msra.mxu0 %v116
    %240 = vmatprep.subr.mxu0 0.0
    %241 = vmatpush1.msra.mxu0 %v117
    %242 = vmatprep.subr.mxu0 0.0
    %243 = vmatpush1.msra.mxu0 %v118
    %244 = vmatprep.subr.mxu0 0.0
    %245 = vmatpush1.msra.mxu0 %v119
    %246 = vmatprep.subr.mxu0 0.0
    %247 = vmatpush1.msra.mxu0 %v120
    %248 = vmatprep.subr.mxu0 0.0
    %249 = vmatpush1.msra.mxu0 %v121
    %250 = vmatprep.subr.mxu0 0.0
    %251 = vmatpush1.msra.mxu0 %v122
    %252 = vmatprep.subr.mxu0 0.0
    %253 = vmatpush1.msra.mxu0 %v123
    %254 = vmatprep.subr.mxu0 0.0
    %255 = vmatpush1.msra.mxu0 %v124
    %256 = vmatprep.subr.mxu0 0.0
    %257 = vmatpush1.msra.mxu0 %v125
    %258 = vmatprep.subr.mxu0 0.0
    %259 = vmatpush1.msra.mxu0 %v126
    %260 = vmatprep.subr.mxu0 0.0
    %261 = vmatpush1.msra.mxu0 %v127
    %262 = vmatprep.subr.mxu0 0.0
    %263 = vmatpush1.msra.mxu0 %v128
    %264 = vmatprep.subr.mxu0 0.0
    %265 = vmatpush1.msra.mxu0 %v129
    %266 = vmatprep.subr.mxu0 0.0
    %267 = vmatpush1.msra.mxu0 %v130
    %268 = vmatprep.subr.mxu0 0.0
    %269 = vmatpush1.msra.mxu0 0.0
    %270 = vmatprep.subr.mxu0 0.0
    %271 = vmatpush1.msra.mxu0 0.0
    %272 = vmatprep.subr.mxu0 0.0
    %273 = vmatpush1.msra.mxu0 0.0
    %274 = vmatprep.subr.mxu0 0.0
    %275 = vmatpush1.msra.mxu0 0.0
    %276 = vmatprep.subr.mxu0 0.0
    %277 = vmatpush1.msra.mxu0 0.0
    %278 = vmatprep.subr.mxu0 0.0
    %279 = vmatpush1.msra.mxu0 0.0
    %280 = vmatprep.subr.mxu0 0.0
    %281 = vmatpush1.msra.mxu0 0.0
    %282 = vmatprep.subr.mxu0 0.0
    %283 = vmatpush1.msra.mxu0 0.0
    %284 = vmatprep.subr.mxu0 0.0
    %285 = vmatpush1.msra.mxu0 0.0
    %286 = vmatprep.subr.mxu0 0.0
    %287 = vmatpush1.msra.mxu0 0.0
    %288 = vmatprep.subr.mxu0 0.0
    %289 = vmatpush1.msra.mxu0 0.0
    %290 = vmatprep.subr.mxu0 0.0
    %291 = vmatpush1.msra.mxu0 0.0
    %292 = vmatprep.subr.mxu0 0.0
    %293 = vmatpush1.msra.mxu0 0.0
    %294 = vmatprep.subr.mxu0 0.0
    %295 = vmatpush1.msra.mxu0 0.0
    %296 = vmatprep.subr.mxu0 0.0
    %297 = vmatpush1.msra.mxu0 0.0
    %298 = vmatprep.subr.mxu0 0.0
    %299 = vmatpush1.msra.mxu0 0.0
    %300 = vmatprep.mubr.f32.mxu0 0.0
    %301 = vmatmul.mubr.f32.gmra.mrb[0].mxu0 %v111
    %v302 = vpop.f32.mrb[0].mxu0
    %v303 = vadd.f32 %v218, %v302
    %v304 = vpop.f32.mrb[0].mxu0
    %305 = vmatprep.mubr.f32.mxu0 0.0
    %306 = vmatmul.mubr.f32.gmra.mrb[0].mxu0 %v112
    %v307 = vpop.f32.mrb[0].mxu0
    %v308 = vadd.f32 %v223, %v307
    %v309 = vpop.f32.mrb[0].mxu0
    %310 = vmatprep.mubr.f32.mxu0 0.0
    %311 = vmatmul.mubr.f32.gmra.mrb[0].mxu0 %v113
    %v312 = vpop.f32.mrb[0].mxu0
    %v313 = vadd.f32 %v228, %v312
    %v314 = vpop.f32.mrb[0].mxu0
    %315 = vmatprep.mubr.f32.mxu0 0.0
    %316 = vmatmul.mubr.f32.gmra.mrb[0].mxu0 %v114
    %v317 = vpop.f32.mrb[0].mxu0
    %v318 = vadd.f32 %v233, %v317
    %v319 = vpop.f32.mrb[0].mxu0
    %320 = vdwg.mxu0
    %v321 = vld [vmem:[#allocation2 + $0x9] sm:$0xff]
    %v322 = vld [vmem:[#allocation2 + $0x11] sm:$0xff]
    %v323 = vld [vmem:[#allocation2 + $0x29] sm:$0xff]
    %v324 = vld [vmem:[#allocation2 + $0x31] sm:$0xff]
    %v325 = vld [vmem:[#allocation6 + $0x100] sm:$0xff]
    %v326 = vld [vmem:[#allocation6 + $0x108] sm:$0xff]
    %v327 = vld [vmem:[#allocation6 + $0x110] sm:$0xff]
    %v328 = vld [vmem:[#allocation6 + $0x118] sm:$0xff]
    %v329 = vld [vmem:[#allocation6 + $0x120] sm:$0xff]
    %v330 = vld [vmem:[#allocation6 + $0x128] sm:$0xff]
    %v331 = vld [vmem:[#allocation6 + $0x130] sm:$0xff]
    %v332 = vld [vmem:[#allocation6 + $0x138] sm:$0xff]
    %v333 = vld [vmem:[#allocation6 + $0x140] sm:$0xff]
    %v334 = vld [vmem:[#allocation6 + $0x148] sm:$0xff]
    %v335 = vld [vmem:[#allocation6 + $0x150] sm:$0xff]
    %v336 = vld [vmem:[#allocation6 + $0x158] sm:$0xff]
    %v337 = vld [vmem:[#allocation6 + $0x160] sm:$0xff]
    %v338 = vld [vmem:[#allocation6 + $0x168] sm:$0xff]
    %v339 = vld [vmem:[#allocation6 + $0x170] sm:$0xff]
    %v340 = vld [vmem:[#allocation6 + $0x178] sm:$0xff]
    %341 = vmatprep.subr.mxu0 0.0
    %342 = vmatpush1.msra.mxu0 %v325
    %343 = vmatprep.subr.mxu0 0.0
    %344 = vmatpush1.msra.mxu0 %v326
    %345 = vmatprep.subr.mxu0 0.0
    %346 = vmatpush1.msra.mxu0 %v327
    %347 = vmatprep.subr.mxu0 0.0
    %348 = vmatpush1.msra.mxu0 %v328
    %349 = vmatprep.subr.mxu0 0.0
    %350 = vmatpush1.msra.mxu0 %v329
    %351 = vmatprep.subr.mxu0 0.0
    %352 = vmatpush1.msra.mxu0 %v330
    %353 = vmatprep.subr.mxu0 0.0
    %354 = vmatpush1.msra.mxu0 %v331
    %355 = vmatprep.subr.mxu0 0.0
    %356 = vmatpush1.msra.mxu0 %v332
    %357 = vmatprep.subr.mxu0 0.0
    %358 = vmatpush1.msra.mxu0 %v333
    %359 = vmatprep.subr.mxu0 0.0
    %360 = vmatpush1.msra.mxu0 %v334
    %361 = vmatprep.subr.mxu0 0.0
    %362 = vmatpush1.msra.mxu0 %v335
    %363 = vmatprep.subr.mxu0 0.0
    %364 = vmatpush1.msra.mxu0 %v336
    %365 = vmatprep.subr.mxu0 0.0
    %366 = vmatpush1.msra.mxu0 %v337
    %367 = vmatprep.subr.mxu0 0.0
    %368 = vmatpush1.msra.mxu0 %v338
    %369 = vmatprep.subr.mxu0 0.0
    %370 = vmatpush1.msra.mxu0 %v339
    %371 = vmatprep.subr.mxu0 0.0
    %372 = vmatpush1.msra.mxu0 %v340
    %373 = vmatprep.subr.mxu0 0.0
    %374 = vmatpush1.msra.mxu0 0.0
    %375 = vmatprep.subr.mxu0 0.0
    %376 = vmatpush1.msra.mxu0 0.0
    %377 = vmatprep.subr.mxu0 0.0
    %378 = vmatpush1.msra.mxu0 0.0
    %379 = vmatprep.subr.mxu0 0.0
    %380 = vmatpush1.msra.mxu0 0.0
    %381 = vmatprep.subr.mxu0 0.0
    %382 = vmatpush1.msra.mxu0 0.0
    %383 = vmatprep.subr.mxu0 0.0
    %384 = vmatpush1.msra.mxu0 0.0
    %385 = vmatprep.subr.mxu0 0.0
    %386 = vmatpush1.msra.mxu0 0.0
    %387 = vmatprep.subr.mxu0 0.0
    %388 = vmatpush1.msra.mxu0 0.0
    %389 = vmatprep.subr.mxu0 0.0
    %390 = vmatpush1.msra.mxu0 0.0
    %391 = vmatprep.subr.mxu0 0.0
    %392 = vmatpush1.msra.mxu0 0.0
    %393 = vmatprep.subr.mxu0 0.0
    %394 = vmatpush1.msra.mxu0 0.0
    %395 = vmatprep.subr.mxu0 0.0
    %396 = vmatpush1.msra.mxu0 0.0
    %397 = vmatprep.subr.mxu0 0.0
    %398 = vmatpush1.msra.mxu0 0.0
    %399 = vmatprep.subr.mxu0 0.0
    %400 = vmatpush1.msra.mxu0 0.0
    %401 = vmatprep.subr.mxu0 0.0
    %402 = vmatpush1.msra.mxu0 0.0
    %403 = vmatprep.subr.mxu0 0.0
    %404 = vmatpush1.msra.mxu0 0.0
    %405 = vmatprep.mubr.f32.mxu0 0.0
    %406 = vmatmul.mubr.f32.gmra.mrb[0].mxu0 %v321
    %v407 = vpop.f32.mrb[0].mxu0
    %v408 = vadd.f32 0.0, %v407
    %v409 = vpop.f32.mrb[0].mxu0
    %410 = vmatprep.mubr.f32.mxu0 0.0
    %411 = vmatmul.mubr.f32.gmra.mrb[0].mxu0 %v322
    %v412 = vpop.f32.mrb[0].mxu0
    %v413 = vadd.f32 0.0, %v412
    %v414 = vpop.f32.mrb[0].mxu0
    %415 = vmatprep.mubr.f32.mxu0 0.0
    %416 = vmatmul.mubr.f32.gmra.mrb[0].mxu0 %v323
    %v417 = vpop.f32.mrb[0].mxu0
    %v418 = vadd.f32 0.0, %v417
    %v419 = vpop.f32.mrb[0].mxu0
    %420 = vmatprep.mubr.f32.mxu0 0.0
    %421 = vmatmul.mubr.f32.gmra.mrb[0].mxu0 %v324
    %v422 = vpop.f32.mrb[0].mxu0
    %v423 = vadd.f32 0.0, %v422
    %v424 = vpop.f32.mrb[0].mxu0
    %425 = vdwg.mxu0
    %v426 = vadd.f32 %v303, %v408
    %v427 = vadd.f32 %v308, %v413
    %v428 = vadd.f32 %v313, %v418
    %v429 = vadd.f32 %v318, %v423
    %v430 = vld [vmem:[#allocation8] sm:$0xff]
    %v431 = vld [vmem:[#allocation8 + $0x8] sm:$0xff]
    %v432 = vld [vmem:[#allocation8 + $0x10] sm:$0xff]
    %v433 = vld [vmem:[#allocation8 + $0x18] sm:$0xff]
    %v434 = vadd.f32 %v426, %v430
    %v435 = vadd.f32 %v427, %v431
    %v436 = vadd.f32 %v428, %v432
    %v437 = vadd.f32 %v429, %v433
    %v438 = vmul.f32 %v434, %v434
    %v439 = vmul.f32 %v435, %v435
    %v440 = vmul.f32 %v436, %v436
    %v441 = vmul.f32 %v437, %v437
    %442 = vmatprep.subr.mxu0 0.0
    %443 = vmatpush1.msra.mxu0 %v87
    %444 = vmatprep.subr.mxu0 0.0
    %445 = vmatpush1.msra.mxu0 %v88
    %446 = vmatprep.subr.mxu0 0.0
    %447 = vmatpush1.msra.mxu0 %v89
    %448 = vmatprep.subr.mxu0 0.0
    %449 = vmatpush1.msra.mxu0 %v90
    %450 = vmatprep.subr.mxu0 0.0
    %451 = vmatpush1.msra.mxu0 %v91
    %452 = vmatprep.subr.mxu0 0.0
    %453 = vmatpush1.msra.mxu0 %v92
    %454 = vmatprep.subr.mxu0 0.0
    %455 = vmatpush1.msra.mxu0 %v93
    %456 = vmatprep.subr.mxu0 0.0
    %457 = vmatpush1.msra.mxu0 %v94
    %458 = vmatprep.subr.mxu0 0.0
    %459 = vmatpush1.msra.mxu0 %v95
    %460 = vmatprep.subr.mxu0 0.0
    %461 = vmatpush1.msra.mxu0 %v96
    %462 = vmatprep.subr.mxu0 0.0
    %463 = vmatpush1.msra.mxu0 %v97
    %464 = vmatprep.subr.mxu0 0.0
    %465 = vmatpush1.msra.mxu0 %v98
    %466 = vmatprep.subr.mxu0 0.0
    %467 = vmatpush1.msra.mxu0 %v99
    %468 = vmatprep.subr.mxu0 0.0
    %469 = vmatpush1.msra.mxu0 %v100
    %470 = vmatprep.subr.mxu0 0.0
    %471 = vmatpush1.msra.mxu0 %v101
    %472 = vmatprep.subr.mxu0 0.0
    %473 = vmatpush1.msra.mxu0 %v102
    %474 = vmatprep.subr.mxu0 0.0
    %475 = vmatpush1.msra.mxu0 0.0
    %476 = vmatprep.subr.mxu0 0.0
    %477 = vmatpush1.msra.mxu0 0.0
    %478 = vmatprep.subr.mxu0 0.0
    %479 = vmatpush1.msra.mxu0 0.0
    %480 = vmatprep.subr.mxu0 0.0
    %481 = vmatpush1.msra.mxu0 0.0
    %482 = vmatprep.subr.mxu0 0.0
    %483 = vmatpush1.msra.mxu0 0.0
    %484 = vmatprep.subr.mxu0 0.0
    %485 = vmatpush1.msra.mxu0 0.0
    %486 = vmatprep.subr.mxu0 0.0
    %487 = vmatpush1.msra.mxu0 0.0
    %488 = vmatprep.subr.mxu0 0.0
    %489 = vmatpush1.msra.mxu0 0.0
    %490 = vmatprep.subr.mxu0 0.0
    %491 = vmatpush1.msra.mxu0 0.0
    %492 = vmatprep.subr.mxu0 0.0
    %493 = vmatpush1.msra.mxu0 0.0
    %494 = vmatprep.subr.mxu0 0.0
    %495 = vmatpush1.msra.mxu0 0.0
    %496 = vmatprep.subr.mxu0 0.0
    %497 = vmatpush1.msra.mxu0 0.0
    %498 = vmatprep.subr.mxu0 0.0
    %499 = vmatpush1.msra.mxu0 0.0
    %500 = vmatprep.subr.mxu0 0.0
    %501 = vmatpush1.msra.mxu0 0.0
    %502 = vmatprep.subr.mxu0 0.0
    %503 = vmatpush1.msra.mxu0 0.0
    %504 = vmatprep.subr.mxu0 0.0
    %505 = vmatpush1.msra.mxu0 0.0
    %506 = vmatprep.mubr.f32.mxu0 0.0
    %507 = vmatmul.mubr.f32.gmra.mrb[0].mxu0 %v434
    %v508 = vpop.f32.mrb[0].mxu0
    %v509 = vadd.f32 0.0, %v508
    %v510 = vpop.f32.mrb[0].mxu0
    %511 = vmatprep.mubr.f32.mxu0 0.0
    %512 = vmatmul.mubr.f32.gmra.mrb[0].mxu0 %v435
    %v513 = vpop.f32.mrb[0].mxu0
    %v514 = vadd.f32 0.0, %v513
    %v515 = vpop.f32.mrb[0].mxu0
    %516 = vmatprep.mubr.f32.mxu0 0.0
    %517 = vmatmul.mubr.f32.gmra.mrb[0].mxu0 %v436
    %v518 = vpop.f32.mrb[0].mxu0
    %v519 = vadd.f32 0.0, %v518
    %v520 = vpop.f32.mrb[0].mxu0
    %521 = vmatprep.mubr.f32.mxu0 0.0
    %522 = vmatmul.mubr.f32.gmra.mrb[0].mxu0 %v437
    %v523 = vpop.f32.mrb[0].mxu0
    %v524 = vadd.f32 0.0, %v523
    %v525 = vpop.f32.mrb[0].mxu0
    %526 = vmatprep.mubr.f32.mxu0 0.0
    %527 = vmatmul.mubr.f32.gmra.mrb[0].mxu0 %v438
    %v528 = vpop.f32.mrb[0].mxu0
    %v529 = vadd.f32 0.0, %v528
    %v530 = vpop.f32.mrb[0].mxu0
    %531 = vmatprep.mubr.f32.mxu0 0.0
    %532 = vmatmul.mubr.f32.gmra.mrb[0].mxu0 %v439
    %v533 = vpop.f32.mrb[0].mxu0
    %v534 = vadd.f32 0.0, %v533
    %v535 = vpop.f32.mrb[0].mxu0
    %536 = vmatprep.mubr.f32.mxu0 0.0
    %537 = vmatmul.mubr.f32.gmra.mrb[0].mxu0 %v440
    %v538 = vpop.f32.mrb[0].mxu0
    %v539 = vadd.f32 0.0, %v538
    %v540 = vpop.f32.mrb[0].mxu0
    %541 = vmatprep.mubr.f32.mxu0 0.0
    %542 = vmatmul.mubr.f32.gmra.mrb[0].mxu0 %v441
    %v543 = vpop.f32.mrb[0].mxu0
    %v544 = vadd.f32 0.0, %v543
    %v545 = vpop.f32.mrb[0].mxu0
    %546 = vdwg.mxu0
    %v547 = vmul.f32 %v509, %v509
    %v548 = vmul.f32 %v514, %v514
    %v549 = vmul.f32 %v519, %v519
    %v550 = vmul.f32 %v524, %v524
    %v551 = vsub.f32 %v529, %v547
    %v552 = vsub.f32 %v534, %v548
    %v553 = vsub.f32 %v539, %v549
    %v554 = vsub.f32 %v544, %v550
    %v555 = vmax.f32 %v551, 0.0
    %v556 = vmax.f32 %v552, 0.0
    %v557 = vmax.f32 %v553, 0.0
    %v558 = vmax.f32 %v554, 0.0
    %v559 = vsub.f32 %v434, %v509
    %v560 = vsub.f32 %v435, %v514
    %v561 = vsub.f32 %v436, %v519
    %v562 = vsub.f32 %v437, %v524
    %v563 = vadd.f32 %v555, 1e-05
    %v564 = vadd.f32 %v556, 1e-05
    %v565 = vadd.f32 %v557, 1e-05
    %v566 = vadd.f32 %v558, 1e-05
    %v567 = vrsqrt.pop %v563
    %v568 = vrsqrt.pop %v564
    %v569 = vrsqrt.pop %v565
    %v570 = vrsqrt.pop %v566
    %v571 = vmul.f32 %v559, %v567
    %v572 = vmul.f32 %v560, %v568
    %v573 = vmul.f32 %v561, %v569
    %v574 = vmul.f32 %v562, %v570
    %v575 = vld [vmem:[%s3] sm:$0x1]
    %v577 = vlaneseq
    %v578 = vshrl.u32 %v577, 7
    %v579 = vsub.s32 0, %v578
    %v580 = vrot.slane %v575, %v579
    %v582 = vmul.f32 %v571, %v580
    %v583 = vmul.f32 %v572, %v580
    %v584 = vmul.f32 %v573, %v580
    %v585 = vmul.f32 %v574, %v580
    %v586 = vld [vmem:[%s4] sm:$0x1]
    %v588 = vlaneseq
    %v589 = vshrl.u32 %v588, 7
    %v590 = vsub.s32 0, %v589
    %v591 = vrot.slane %v586, %v590
    %v593 = vadd.f32 %v582, %v591
    %v594 = vadd.f32 %v583, %v591
    %v595 = vadd.f32 %v584, %v591
    %v596 = vadd.f32 %v585, %v591
    %v597 = vmax.f32 %v593, 0.0
    %v598 = vmax.f32 %v594, 0.0
    %v599 = vmax.f32 %v595, 0.0
    %v600 = vmax.f32 %v596, 0.0
    %601 = vst [vmem:[#allocation2 + $0x8] sm:$0xff] %v597
    %602 = vst [vmem:[#allocation2 + $0x10] sm:$0xff] %v598
    %603 = vst [vmem:[#allocation2 + $0x28] sm:$0xff] %v599
    %604 = vst [vmem:[#allocation2 + $0x30] sm:$0xff] %v600
    %v605 = vld [vmem:[#allocation2 + $0x7] sm:$0xff]
    %v606 = vld [vmem:[#allocation2 + $0xf] sm:$0xff]
    %v607 = vld [vmem:[#allocation2 + $0x27] sm:$0xff]
    %v608 = vld [vmem:[#allocation2 + $0x2f] sm:$0xff]
    %s609 = scalar_lea.vmem [#allocation6], 384
    %v610 = vld [vmem:[%s609] sm:$0xff]
    %v611 = vld [vmem:[%s609 + $0x8] sm:$0xff]
    %v612 = vld [vmem:[%s609 + $0x10] sm:$0xff]
    %v613 = vld [vmem:[%s609 + $0x18] sm:$0xff]
    %v614 = vld [vmem:[%s609 + $0x20] sm:$0xff]
    %v615 = vld [vmem:[%s609 + $0x28] sm:$0xff]
    %v616 = vld [vmem:[%s609 + $0x30] sm:$0xff]
    %v617 = vld [vmem:[%s609 + $0x38] sm:$0xff]
    %v618 = vld [vmem:[%s609 + $0x40] sm:$0xff]
    %v619 = vld [vmem:[%s609 + $0x48] sm:$0xff]
    %v620 = vld [vmem:[%s609 + $0x50] sm:$0xff]
    %v621 = vld [vmem:[%s609 + $0x58] sm:$0xff]
    %v622 = vld [vmem:[%s609 + $0x60] sm:$0xff]
    %v623 = vld [vmem:[%s609 + $0x68] sm:$0xff]
    %v624 = vld [vmem:[%s609 + $0x70] sm:$0xff]
    %v625 = vld [vmem:[%s609 + $0x78] sm:$0xff]
    %v626 = vld [vmem:[#allocation2 + $0x8] sm:$0xff]
    %v627 = vld [vmem:[#allocation2 + $0x10] sm:$0xff]
    %v628 = vld [vmem:[#allocation2 + $0x28] sm:$0xff]
    %v629 = vld [vmem:[#allocation2 + $0x30] sm:$0xff]
    %v630 = vld [vmem:[%s609 + $0x80] sm:$0xff]
    %v631 = vld [vmem:[%s609 + $0x88] sm:$0xff]
    %v632 = vld [vmem:[%s609 + $0x90] sm:$0xff]
    %v633 = vld [vmem:[%s609 + $0x98] sm:$0xff]
    %v634 = vld [vmem:[%s609 + $0xa0] sm:$0xff]
    %v635 = vld [vmem:[%s609 + $0xa8] sm:$0xff]
    %v636 = vld [vmem:[%s609 + $0xb0] sm:$0xff]
    %v637 = vld [vmem:[%s609 + $0xb8] sm:$0xff]
    %v638 = vld [vmem:[%s609 + $0xc0] sm:$0xff]
    %v639 = vld [vmem:[%s609 + $0xc8] sm:$0xff]
    %v640 = vld [vmem:[%s609 + $0xd0] sm:$0xff]
    %v641 = vld [vmem:[%s609 + $0xd8] sm:$0xff]
    %v642 = vld [vmem:[%s609 + $0xe0] sm:$0xff]
    %v643 = vld [vmem:[%s609 + $0xe8] sm:$0xff]
    %v644 = vld [vmem:[%s609 + $0xf0] sm:$0xff]
    %v645 = vld [vmem:[%s609 + $0xf8] sm:$0xff]
    %646 = vmatprep.subr.mxu0 0.0
    %647 = vmatpush1.msra.mxu0 %v630
    %648 = vmatprep.subr.mxu0 0.0
    %649 = vmatpush1.msra.mxu0 %v631
    %650 = vmatprep.subr.mxu0 0.0
    %651 = vmatpush1.msra.mxu0 %v632
    %652 = vmatprep.subr.mxu0 0.0
    %653 = vmatpush1.msra.mxu0 %v633
    %654 = vmatprep.subr.mxu0 0.0
    %655 = vmatpush1.msra.mxu0 %v634
    %656 = vmatprep.subr.mxu0 0.0
    %657 = vmatpush1.msra.mxu0 %v635
    %658 = vmatprep.subr.mxu0 0.0
    %659 = vmatpush1.msra.mxu0 %v636
    %660 = vmatprep.subr.mxu0 0.0
    %661 = vmatpush1.msra.mxu0 %v637
    %662 = vmatprep.subr.mxu0 0.0
    %663 = vmatpush1.msra.mxu0 %v638
    %664 = vmatprep.subr.mxu0 0.0
    %665 = vmatpush1.msra.mxu0 %v639
    %666 = vmatprep.subr.mxu0 0.0
    %667 = vmatpush1.msra.mxu0 %v640
    %668 = vmatprep.subr.mxu0 0.0
    %669 = vmatpush1.msra.mxu0 %v641
    %670 = vmatprep.subr.mxu0 0.0
    %671 = vmatpush1.msra.mxu0 %v642
    %672 = vmatprep.subr.mxu0 0.0
    %673 = vmatpush1.msra.mxu0 %v643
    %674 = vmatprep.subr.mxu0 0.0
    %675 = vmatpush1.msra.mxu0 %v644
    %676 = vmatprep.subr.mxu0 0.0
    %677 = vmatpush1.msra.mxu0 %v645
    %678 = vmatprep.subr.mxu0 0.0
    %679 = vmatpush1.msra.mxu0 0.0
    %680 = vmatprep.subr.mxu0 0.0
    %681 = vmatpush1.msra.mxu0 0.0
    %682 = vmatprep.subr.mxu0 0.0
    %683 = vmatpush1.msra.mxu0 0.0
    %684 = vmatprep.subr.mxu0 0.0
    %685 = vmatpush1.msra.mxu0 0.0
    %686 = vmatprep.subr.mxu0 0.0
    %687 = vmatpush1.msra.mxu0 0.0
    %688 = vmatprep.subr.mxu0 0.0
    %689 = vmatpush1.msra.mxu0 0.0
    %690 = vmatprep.subr.mxu0 0.0
    %691 = vmatpush1.msra.mxu0 0.0
    %692 = vmatprep.subr.mxu0 0.0
    %693 = vmatpush1.msra.mxu0 0.0
    %694 = vmatprep.subr.mxu0 0.0
    %695 = vmatpush1.msra.mxu0 0.0
    %696 = vmatprep.subr.mxu0 0.0
    %697 = vmatpush1.msra.mxu0 0.0
    %698 = vmatprep.subr.mxu0 0.0
    %699 = vmatpush1.msra.mxu0 0.0
    %700 = vmatprep.subr.mxu0 0.0
    %701 = vmatpush1.msra.mxu0 0.0
    %702 = vmatprep.subr.mxu0 0.0
    %703 = vmatpush1.msra.mxu0 0.0
    %704 = vmatprep.subr.mxu0 0.0
    %705 = vmatpush1.msra.mxu0 0.0
    %706 = vmatprep.subr.mxu0 0.0
    %707 = vmatpush1.msra.mxu0 0.0
    %708 = vmatprep.subr.mxu0 0.0
    %709 = vmatpush1.msra.mxu0 0.0
    %710 = vmatprep.mubr.f32.mxu0 0.0
    %711 = vmatmul.mubr.f32.gmra.mrb[0].mxu0 %v626
    %v712 = vpop.f32.mrb[0].mxu0
    %v713 = vadd.f32 0.0, %v712
    %v714 = vpop.f32.mrb[0].mxu0
    %715 = vmatprep.mubr.f32.mxu0 0.0
    %716 = vmatmul.mubr.f32.gmra.mrb[0].mxu0 %v627
    %v717 = vpop.f32.mrb[0].mxu0
    %v718 = vadd.f32 0.0, %v717
    %v719 = vpop.f32.mrb[0].mxu0
    %720 = vmatprep.mubr.f32.mxu0 0.0
    %721 = vmatmul.mubr.f32.gmra.mrb[0].mxu0 %v628
    %v722 = vpop.f32.mrb[0].mxu0
    %v723 = vadd.f32 0.0, %v722
    %v724 = vpop.f32.mrb[0].mxu0
    %725 = vmatprep.mubr.f32.mxu0 0.0
    %726 = vmatmul.mubr.f32.gmra.mrb[0].mxu0 %v629
    %v727 = vpop.f32.mrb[0].mxu0
    %v728 = vadd.f32 0.0, %v727
    %v729 = vpop.f32.mrb[0].mxu0
    %730 = vdwg.mxu0
    %731 = vmatprep.subr.mxu0 0.0
    %732 = vmatpush1.msra.mxu0 %v610
    %733 = vmatprep.subr.mxu0 0.0
    %734 = vmatpush1.msra.mxu0 %v611
    %735 = vmatprep.subr.mxu0 0.0
    %736 = vmatpush1.msra.mxu0 %v612
    %737 = vmatprep.subr.mxu0 0.0
    %738 = vmatpush1.msra.mxu0 %v613
    %739 = vmatprep.subr.mxu0 0.0
    %740 = vmatpush1.msra.mxu0 %v614
    %741 = vmatprep.subr.mxu0 0.0
    %742 = vmatpush1.msra.mxu0 %v615
    %743 = vmatprep.subr.mxu0 0.0
    %744 = vmatpush1.msra.mxu0 %v616
    %745 = vmatprep.subr.mxu0 0.0
    %746 = vmatpush1.msra.mxu0 %v617
    %747 = vmatprep.subr.mxu0 0.0
    %748 = vmatpush1.msra.mxu0 %v618
    %749 = vmatprep.subr.mxu0 0.0
    %750 = vmatpush1.msra.mxu0 %v619
    %751 = vmatprep.subr.mxu0 0.0
    %752 = vmatpush1.msra.mxu0 %v620
    %753 = vmatprep.subr.mxu0 0.0
    %754 = vmatpush1.msra.mxu0 %v621
    %755 = vmatprep.subr.mxu0 0.0
    %756 = vmatpush1.msra.mxu0 %v622
    %757 = vmatprep.subr.mxu0 0.0
    %758 = vmatpush1.msra.mxu0 %v623
    %759 = vmatprep.subr.mxu0 0.0
    %760 = vmatpush1.msra.mxu0 %v624
    %761 = vmatprep.subr.mxu0 0.0
    %762 = vmatpush1.msra.mxu0 %v625
    %763 = vmatprep.subr.mxu0 0.0
    %764 = vmatpush1.msra.mxu0 0.0
    %765 = vmatprep.subr.mxu0 0.0
    %766 = vmatpush1.msra.mxu0 0.0
    %767 = vmatprep.subr.mxu0 0.0
    %768 = vmatpush1.msra.mxu0 0.0
    %769 = vmatprep.subr.mxu0 0.0
    %770 = vmatpush1.msra.mxu0 0.0
    %771 = vmatprep.subr.mxu0 0.0
    %772 = vmatpush1.msra.mxu0 0.0
    %773 = vmatprep.subr.mxu0 0.0
    %774 = vmatpush1.msra.mxu0 0.0
    %775 = vmatprep.subr.mxu0 0.0
    %776 = vmatpush1.msra.mxu0 0.0
    %777 = vmatprep.subr.mxu0 0.0
    %778 = vmatpush1.msra.mxu0 0.0
    %779 = vmatprep.subr.mxu0 0.0
    %780 = vmatpush1.msra.mxu0 0.0
    %781 = vmatprep.subr.mxu0 0.0
    %782 = vmatpush1.msra.mxu0 0.0
    %783 = vmatprep.subr.mxu0 0.0
    %784 = vmatpush1.msra.mxu0 0.0
    %785 = vmatprep.subr.mxu0 0.0
    %786 = vmatpush1.msra.mxu0 0.0
    %787 = vmatprep.subr.mxu0 0.0
    %788 = vmatpush1.msra.mxu0 0.0
    %789 = vmatprep.subr.mxu0 0.0
    %790 = vmatpush1.msra.mxu0 0.0
    %791 = vmatprep.subr.mxu0 0.0
    %792 = vmatpush1.msra.mxu0 0.0
    %793 = vmatprep.subr.mxu0 0.0
    %794 = vmatpush1.msra.mxu0 0.0
    %795 = vmatprep.mubr.f32.mxu0 0.0
    %796 = vmatmul.mubr.f32.gmra.mrb[0].mxu0 %v605
    %v797 = vpop.f32.mrb[0].mxu0
    %v798 = vadd.f32 %v713, %v797
    %v799 = vpop.f32.mrb[0].mxu0
    %800 = vmatprep.mubr.f32.mxu0 0.0
    %801 = vmatmul.mubr.f32.gmra.mrb[0].mxu0 %v606
    %v802 = vpop.f32.mrb[0].mxu0
    %v803 = vadd.f32 %v718, %v802
    %v804 = vpop.f32.mrb[0].mxu0
    %805 = vmatprep.mubr.f32.mxu0 0.0
    %806 = vmatmul.mubr.f32.gmra.mrb[0].mxu0 %v607
    %v807 = vpop.f32.mrb[0].mxu0
    %v808 = vadd.f32 %v723, %v807
    %v809 = vpop.f32.mrb[0].mxu0
    %810 = vmatprep.mubr.f32.mxu0 0.0
    %811 = vmatmul.mubr.f32.gmra.mrb[0].mxu0 %v608
    %v812 = vpop.f32.mrb[0].mxu0
    %v813 = vadd.f32 %v728, %v812
    %v814 = vpop.f32.mrb[0].mxu0
    %815 = vdwg.mxu0
    %v816 = vld [vmem:[#allocation2 + $0x9] sm:$0xff]
    %v817 = vld [vmem:[#allocation2 + $0x11] sm:$0xff]
    %v818 = vld [vmem:[#allocation2 + $0x29] sm:$0xff]
    %v819 = vld [vmem:[#allocation2 + $0x31] sm:$0xff]
    %v820 = vld [vmem:[%s609 + $0x100] sm:$0xff]
    %v821 = vld [vmem:[%s609 + $0x108] sm:$0xff]
    %v822 = vld [vmem:[%s609 + $0x110] sm:$0xff]
    %v823 = vld [vmem:[%s609 + $0x118] sm:$0xff]
    %v824 = vld [vmem:[%s609 + $0x120] sm:$0xff]
    %v825 = vld [vmem:[%s609 + $0x128] sm:$0xff]
    %v826 = vld [vmem:[%s609 + $0x130] sm:$0xff]
    %v827 = vld [vmem:[%s609 + $0x138] sm:$0xff]
    %v828 = vld [vmem:[%s609 + $0x140] sm:$0xff]
    %v829 = vld [vmem:[%s609 + $0x148] sm:$0xff]
    %v830 = vld [vmem:[%s609 + $0x150] sm:$0xff]
    %v831 = vld [vmem:[%s609 + $0x158] sm:$0xff]
    %v832 = vld [vmem:[%s609 + $0x160] sm:$0xff]
    %v833 = vld [vmem:[%s609 + $0x168] sm:$0xff]
    %v834 = vld [vmem:[%s609 + $0x170] sm:$0xff]
    %v835 = vld [vmem:[%s609 + $0x178] sm:$0xff]
    %836 = vmatprep.subr.mxu0 0.0
    %837 = vmatpush1.msra.mxu0 %v820
    %838 = vmatprep.subr.mxu0 0.0
    %839 = vmatpush1.msra.mxu0 %v821
    %840 = vmatprep.subr.mxu0 0.0
    %841 = vmatpush1.msra.mxu0 %v822
    %842 = vmatprep.subr.mxu0 0.0
    %843 = vmatpush1.msra.mxu0 %v823
    %844 = vmatprep.subr.mxu0 0.0
    %845 = vmatpush1.msra.mxu0 %v824
    %846 = vmatprep.subr.mxu0 0.0
    %847 = vmatpush1.msra.mxu0 %v825
    %848 = vmatprep.subr.mxu0 0.0
    %849 = vmatpush1.msra.mxu0 %v826
    %850 = vmatprep.subr.mxu0 0.0
    %851 = vmatpush1.msra.mxu0 %v827
    %852 = vmatprep.subr.mxu0 0.0
    %853 = vmatpush1.msra.mxu0 %v828
    %854 = vmatprep.subr.mxu0 0.0
    %855 = vmatpush1.msra.mxu0 %v829
    %856 = vmatprep.subr.mxu0 0.0
    %857 = vmatpush1.msra.mxu0 %v830
    %858 = vmatprep.subr.mxu0 0.0
    %859 = vmatpush1.msra.mxu0 %v831
    %860 = vmatprep.subr.mxu0 0.0
    %861 = vmatpush1.msra.mxu0 %v832
    %862 = vmatprep.subr.mxu0 0.0
    %863 = vmatpush1.msra.mxu0 %v833
    %864 = vmatprep.subr.mxu0 0.0
    %865 = vmatpush1.msra.mxu0 %v834
    %866 = vmatprep.subr.mxu0 0.0
    %867 = vmatpush1.msra.mxu0 %v835
    %868 = vmatprep.subr.mxu0 0.0
    %869 = vmatpush1.msra.mxu0 0.0
    %870 = vmatprep.subr.mxu0 0.0
    %871 = vmatpush1.msra.mxu0 0.0
    %872 = vmatprep.subr.mxu0 0.0
    %873 = vmatpush1.msra.mxu0 0.0
    %874 = vmatprep.subr.mxu0 0.0
    %875 = vmatpush1.msra.mxu0 0.0
    %876 = vmatprep.subr.mxu0 0.0
    %877 = vmatpush1.msra.mxu0 0.0
    %878 = vmatprep.subr.mxu0 0.0
    %879 = vmatpush1.msra.mxu0 0.0
    %880 = vmatprep.subr.mxu0 0.0
    %881 = vmatpush1.msra.mxu0 0.0
    %882 = vmatprep.subr.mxu0 0.0
    %883 = vmatpush1.msra.mxu0 0.0
    %884 = vmatprep.subr.mxu0 0.0
    %885 = vmatpush1.msra.mxu0 0.0
    %886 = vmatprep.subr.mxu0 0.0
    %887 = vmatpush1.msra.mxu0 0.0
    %888 = vmatprep.subr.mxu0 0.0
    %889 = vmatpush1.msra.mxu0 0.0
    %890 = vmatprep.subr.mxu0 0.0
    %891 = vmatpush1.msra.mxu0 0.0
    %892 = vmatprep.subr.mxu0 0.0
    %893 = vmatpush1.msra.mxu0 0.0
    %894 = vmatprep.subr.mxu0 0.0
    %895 = vmatpush1.msra.mxu0 0.0
    %896 = vmatprep.subr.mxu0 0.0
    %897 = vmatpush1.msra.mxu0 0.0
    %898 = vmatprep.subr.mxu0 0.0
    %899 = vmatpush1.msra.mxu0 0.0
    %900 = vmatprep.mubr.f32.mxu0 0.0
    %901 = vmatmul.mubr.f32.gmra.mrb[0].mxu0 %v816
    %v902 = vpop.f32.mrb[0].mxu0
    %v903 = vadd.f32 0.0, %v902
    %v904 = vpop.f32.mrb[0].mxu0
    %905 = vmatprep.mubr.f32.mxu0 0.0
    %906 = vmatmul.mubr.f32.gmra.mrb[0].mxu0 %v817
    %v907 = vpop.f32.mrb[0].mxu0
    %v908 = vadd.f32 0.0, %v907
    %v909 = vpop.f32.mrb[0].mxu0
    %910 = vmatprep.mubr.f32.mxu0 0.0
    %911 = vmatmul.mubr.f32.gmra.mrb[0].mxu0 %v818
    %v912 = vpop.f32.mrb[0].mxu0
    %v913 = vadd.f32 0.0, %v912
    %v914 = vpop.f32.mrb[0].mxu0
    %915 = vmatprep.mubr.f32.mxu0 0.0
    %916 = vmatmul.mubr.f32.gmra.mrb[0].mxu0 %v819
    %v917 = vpop.f32.mrb[0].mxu0
    %v918 = vadd.f32 0.0, %v917
    %v919 = vpop.f32.mrb[0].mxu0
    %920 = vdwg.mxu0
    %v921 = vadd.f32 %v798, %v903
    %v922 = vadd.f32 %v803, %v908
    %v923 = vadd.f32 %v808, %v913
    %v924 = vadd.f32 %v813, %v918
    %s925 = scalar_lea.vmem [#allocation8], 32
    %v926 = vld [vmem:[%s925] sm:$0xff]
    %v927 = vld [vmem:[%s925 + $0x8] sm:$0xff]
    %v928 = vld [vmem:[%s925 + $0x10] sm:$0xff]
    %v929 = vld [vmem:[%s925 + $0x18] sm:$0xff]
    %v930 = vadd.f32 %v921, %v926
    %v931 = vadd.f32 %v922, %v927
    %v932 = vadd.f32 %v923, %v928
    %v933 = vadd.f32 %v924, %v929
    %v934 = vmul.f32 %v930, %v930
    %v935 = vmul.f32 %v931, %v931
    %v936 = vmul.f32 %v932, %v932
    %v937 = vmul.f32 %v933, %v933
    %938 = vmatprep.subr.mxu0 0.0
    %939 = vmatpush1.msra.mxu0 %v87
    %940 = vmatprep.subr.mxu0 0.0
    %941 = vmatpush1.msra.mxu0 %v88
    %942 = vmatprep.subr.mxu0 0.0
    %943 = vmatpush1.msra.mxu0 %v89
    %944 = vmatprep.subr.mxu0 0.0
    %945 = vmatpush1.msra.mxu0 %v90
    %946 = vmatprep.subr.mxu0 0.0
    %947 = vmatpush1.msra.mxu0 %v91
    %948 = vmatprep.subr.mxu0 0.0
    %949 = vmatpush1.msra.mxu0 %v92
    %950 = vmatprep.subr.mxu0 0.0
    %951 = vmatpush1.msra.mxu0 %v93
    %952 = vmatprep.subr.mxu0 0.0
    %953 = vmatpush1.msra.mxu0 %v94
    %954 = vmatprep.subr.mxu0 0.0
    %955 = vmatpush1.msra.mxu0 %v95
    %956 = vmatprep.subr.mxu0 0.0
    %957 = vmatpush1.msra.mxu0 %v96
    %958 = vmatprep.subr.mxu0 0.0
    %959 = vmatpush1.msra.mxu0 %v97
    %960 = vmatprep.subr.mxu0 0.0
    %961 = vmatpush1.msra.mxu0 %v98
    %962 = vmatprep.subr.mxu0 0.0
    %963 = vmatpush1.msra.mxu0 %v99
    %964 = vmatprep.subr.mxu0 0.0
    %965 = vmatpush1.msra.mxu0 %v100
    %966 = vmatprep.subr.mxu0 0.0
    %967 = vmatpush1.msra.mxu0 %v101
    %968 = vmatprep.subr.mxu0 0.0
    %969 = vmatpush1.msra.mxu0 %v102
    %970 = vmatprep.subr.mxu0 0.0
    %971 = vmatpush1.msra.mxu0 0.0
    %972 = vmatprep.subr.mxu0 0.0
    %973 = vmatpush1.msra.mxu0 0.0
    %974 = vmatprep.subr.mxu0 0.0
    %975 = vmatpush1.msra.mxu0 0.0
    %976 = vmatprep.subr.mxu0 0.0
    %977 = vmatpush1.msra.mxu0 0.0
    %978 = vmatprep.subr.mxu0 0.0
    %979 = vmatpush1.msra.mxu0 0.0
    %980 = vmatprep.subr.mxu0 0.0
    %981 = vmatpush1.msra.mxu0 0.0
    %982 = vmatprep.subr.mxu0 0.0
    %983 = vmatpush1.msra.mxu0 0.0
    %984 = vmatprep.subr.mxu0 0.0
    %985 = vmatpush1.msra.mxu0 0.0
    %986 = vmatprep.subr.mxu0 0.0
    %987 = vmatpush1.msra.mxu0 0.0
    %988 = vmatprep.subr.mxu0 0.0
    %989 = vmatpush1.msra.mxu0 0.0
    %990 = vmatprep.subr.mxu0 0.0
    %991 = vmatpush1.msra.mxu0 0.0
    %992 = vmatprep.subr.mxu0 0.0
    %993 = vmatpush1.msra.mxu0 0.0
    %994 = vmatprep.subr.mxu0 0.0
    %995 = vmatpush1.msra.mxu0 0.0
    %996 = vmatprep.subr.mxu0 0.0
    %997 = vmatpush1.msra.mxu0 0.0
    %998 = vmatprep.subr.mxu0 0.0
    %999 = vmatpush1.msra.mxu0 0.0
    %1000 = vmatprep.subr.mxu0 0.0
    %1001 = vmatpush1.msra.mxu0 0.0
    %1002 = vmatprep.mubr.f32.mxu0 0.0
    %1003 = vmatmul.mubr.f32.gmra.mrb[0].mxu0 %v930
    %v1004 = vpop.f32.mrb[0].mxu0
    %v1005 = vadd.f32 0.0, %v1004
    %v1006 = vpop.f32.mrb[0].mxu0
    %1007 = vmatprep.mubr.f32.mxu0 0.0
    %1008 = vmatmul.mubr.f32.gmra.mrb[0].mxu0 %v931
    %v1009 = vpop.f32.mrb[0].mxu0
    %v1010 = vadd.f32 0.0, %v1009
    %v1011 = vpop.f32.mrb[0].mxu0
    %1012 = vmatprep.mubr.f32.mxu0 0.0
    %1013 = vmatmul.mubr.f32.gmra.mrb[0].mxu0 %v932
    %v1014 = vpop.f32.mrb[0].mxu0
    %v1015 = vadd.f32 0.0, %v1014
    %v1016 = vpop.f32.mrb[0].mxu0
    %1017 = vmatprep.mubr.f32.mxu0 0.0
    %1018 = vmatmul.mubr.f32.gmra.mrb[0].mxu0 %v933
    %v1019 = vpop.f32.mrb[0].mxu0
    %v1020 = vadd.f32 0.0, %v1019
    %v1021 = vpop.f32.mrb[0].mxu0
    %1022 = vmatprep.mubr.f32.mxu0 0.0
    %1023 = vmatmul.mubr.f32.gmra.mrb[0].mxu0 %v934
    %v1024 = vpop.f32.mrb[0].mxu0
    %v1025 = vadd.f32 0.0, %v1024
    %v1026 = vpop.f32.mrb[0].mxu0
    %1027 = vmatprep.mubr.f32.mxu0 0.0
    %1028 = vmatmul.mubr.f32.gmra.mrb[0].mxu0 %v935
    %v1029 = vpop.f32.mrb[0].mxu0
    %v1030 = vadd.f32 0.0, %v1029
    %v1031 = vpop.f32.mrb[0].mxu0
    %1032 = vmatprep.mubr.f32.mxu0 0.0
    %1033 = vmatmul.mubr.f32.gmra.mrb[0].mxu0 %v936
    %v1034 = vpop.f32.mrb[0].mxu0
    %v1035 = vadd.f32 0.0, %v1034
    %v1036 = vpop.f32.mrb[0].mxu0
    %1037 = vmatprep.mubr.f32.mxu0 0.0
    %1038 = vmatmul.mubr.f32.gmra.mrb[0].mxu0 %v937
    %v1039 = vpop.f32.mrb[0].mxu0
    %v1040 = vadd.f32 0.0, %v1039
    %v1041 = vpop.f32.mrb[0].mxu0
    %1042 = vdwg.mxu0
    %v1043 = vmul.f32 %v1005, %v1005
    %v1044 = vmul.f32 %v1010, %v1010
    %v1045 = vmul.f32 %v1015, %v1015
    %v1046 = vmul.f32 %v1020, %v1020
    %v1047 = vsub.f32 %v1025, %v1043
    %v1048 = vsub.f32 %v1030, %v1044
    %v1049 = vsub.f32 %v1035, %v1045
    %v1050 = vsub.f32 %v1040, %v1046
    %v1051 = vmax.f32 %v1047, 0.0
    %v1052 = vmax.f32 %v1048, 0.0
    %v1053 = vmax.f32 %v1049, 0.0
    %v1054 = vmax.f32 %v1050, 0.0
    %v1055 = vsub.f32 %v930, %v1005
    %v1056 = vsub.f32 %v931, %v1010
    %v1057 = vsub.f32 %v932, %v1015
    %v1058 = vsub.f32 %v933, %v1020
    %v1059 = vadd.f32 %v1051, 1e-05
    %v1060 = vadd.f32 %v1052, 1e-05
    %v1061 = vadd.f32 %v1053, 1e-05
    %v1062 = vadd.f32 %v1054, 1e-05
    %v1063 = vrsqrt.pop %v1059
    %v1064 = vrsqrt.pop %v1060
    %v1065 = vrsqrt.pop %v1061
    %v1066 = vrsqrt.pop %v1062
    %v1067 = vmul.f32 %v1055, %v1063
    %v1068 = vmul.f32 %v1056, %v1064
    %v1069 = vmul.f32 %v1057, %v1065
    %v1070 = vmul.f32 %v1058, %v1066
    %s1071 = scalar_lea.vmem %s3, 1
    %v1072 = vld [vmem:[%s1071] sm:$0x1]
    %v1074 = vlaneseq
    %v1075 = vshrl.u32 %v1074, 7
    %v1076 = vsub.s32 0, %v1075
    %v1077 = vrot.slane %v1072, %v1076
    %v1079 = vmul.f32 %v1067, %v1077
    %v1080 = vmul.f32 %v1068, %v1077
    %v1081 = vmul.f32 %v1069, %v1077
    %v1082 = vmul.f32 %v1070, %v1077
    %s1083 = scalar_lea.vmem %s4, 1
    %v1084 = vld [vmem:[%s1083] sm:$0x1]
    %v1086 = vlaneseq
    %v1087 = vshrl.u32 %v1086, 7
    %v1088 = vsub.s32 0, %v1087
    %v1089 = vrot.slane %v1084, %v1088
    %v1091 = vadd.f32 %v1079, %v1089
    %v1092 = vadd.f32 %v1080, %v1089
    %v1093 = vadd.f32 %v1081, %v1089
    %v1094 = vadd.f32 %v1082, %v1089
    %v1095 = vmax.f32 %v1091, 0.0
    %v1096 = vmax.f32 %v1092, 0.0
    %v1097 = vmax.f32 %v1093, 0.0
    %v1098 = vmax.f32 %v1094, 0.0
    %1099 = vst [vmem:[#allocation11] sm:$0xff] %v1095
    %1100 = vst [vmem:[#allocation11 + $0x8] sm:$0xff] %v1096
    %1101 = vst [vmem:[#allocation11 + $0x10] sm:$0xff] %v1097
    %1102 = vst [vmem:[#allocation11 + $0x18] sm:$0xff] %v1098
    // Predicated region
    $region42: #{tpu_custom_call.1} parent=1 // pred_check
      _
    $region43: #{tpu_custom_call.1} parent=1 // pred_check_branch
      %1104 = sbr.rel (0) target = $region45
    $region44: #{tpu_custom_call.1} parent=1 // pred_region
      %s1106 = ssub.s32 512, 512
      %1107 = vsyncadd [#allocation5], %s1106
      %s1108 = sshll.u32 [#allocation11], 4
      %s1109 = int_to_ptr.vmem [resolvable:$true] %s1108
      %1114 = dma.vmem_to_hbm [thread:$0]  %s1109, 512, %s6, [#allocation5], 128, 128, 8
    $region45: #{tpu_custom_call.1} parent=1 // pred_fallthru
      _
    // Predicated region
    $region46: #{tpu_custom_call.1} parent=1 // pred_check
      _
    $region47: #{tpu_custom_call.1} parent=1 // pred_check_branch
      %1116 = sbr.rel (0) target = $region49
    $region48: #{tpu_custom_call.1} parent=1 // pred_region
      %1117 = dma.done [#allocation5], 512
    $region49: #{tpu_custom_call.1} parent=1 // pred_fallthru
      _
    %1118 = vsyncpa [#allocation4], 1
    %1119 = vsyncpa [#allocation7], 1
    %1120 = vsyncpa [#allocation10], 1
    %1121 = vsyncpa [#allocation5], 1

</llo_original>
